<compile_context>
chip_gen: v7x
topology: tpu7x:2x2x1
jax: 0.10.0
libtpu: 0.0.40
codegen_flags: <defaults>
</compile_context>

<pallas_src>
import math
import functools

import jax
import jax.numpy as jnp
from jax.experimental import pallas as pl
from jax.experimental.pallas import tpu as pltpu


# ----------------------------- config ---------------------------------------
class Config:
    vocab_size = 100
    hidden_size = 32
    num_hidden_layers = 2
    num_attention_heads = 4
    intermediate_size = 64
    max_position_embeddings = 64
    type_vocab_size = 2
    pad_token_id = 0
    layer_norm_eps = 1e-12
    initializer_range = 0.02
    hidden_act = "gelu"
    hidden_dropout_prob = 0.0
    attention_probs_dropout_prob = 0.0


# ----------------------------- fused kernel ---------------------------------
def _layernorm(x, g, b, eps):
    mean = jnp.mean(x, axis=-1, keepdims=True)
    xc = x - mean
    var = jnp.mean(xc * xc, axis=-1, keepdims=True)
    return xc * jax.lax.rsqrt(var + eps) * g + b


def _fused_bert_kernel(n_heads, eps,
                       # per-sequence resident inputs
                       emb_ref, kbias_ref, emb_g_ref, emb_b_ref,
                       # per-layer (stacked) weights, one block per layer step
                       wqkv_ref, bqkv_ref, wo_ref, bo_ref,
                       ln1g_ref, ln1b_ref,
                       w1_ref, b1_ref, w2_ref, b2_ref,
                       ln2g_ref, ln2b_ref,
                       # pooler params (resident)
                       poolw_ref, poolb_ref,
                       # outputs (resident across the layer axis)
                       hid_ref, pooled_ref):
    layer = pl.program_id(1)
    n_layers = pl.num_programs(1)

    # ---- layer 0: embedding LayerNorm seeds the resident hidden slab --------
    @pl.when(layer == 0)
    def _():
        hid_ref[...] = _layernorm(emb_ref[...], emb_g_ref[...], emb_b_ref[...],
                                  eps).astype(hid_ref.dtype)

    h = hid_ref[...]                         # [S, H] f32, VMEM-resident carry
    S, H = h.shape
    dh = H // n_heads
    scale = 1.0 / math.sqrt(dh)
    kbias = kbias_ref[0]                     # [1, S] additive key bias (this seq)

    # ---- self-attention ------------------------------------------------------
    h_bf = h.astype(jnp.bfloat16)
    q = jnp.dot(h_bf, wqkv_ref[0, 0], preferred_element_type=jnp.float32) + bqkv_ref[0, 0]
    k = jnp.dot(h_bf, wqkv_ref[0, 1], preferred_element_type=jnp.float32) + bqkv_ref[0, 1]
    v = jnp.dot(h_bf, wqkv_ref[0, 2], preferred_element_type=jnp.float32) + bqkv_ref[0, 2]
    q = q * scale                            # fold 1/sqrt(dh) into q once
    v_bf = v.astype(jnp.bfloat16)

    ctx_heads = []
    for hd in range(n_heads):                # static nH unroll, [S, S] per head
        lo, hi = hd * dh, (hd + 1) * dh
        s = jnp.dot(q[:, lo:hi].astype(jnp.bfloat16),
                    k[:, lo:hi].T.astype(jnp.bfloat16),
                    preferred_element_type=jnp.float32) + kbias
        m = jnp.max(s, axis=-1, keepdims=True)          # softmax stats in f32
        p = jnp.exp(s - m)
        # approx reciprocal runs on the EUP slot; small deviation from exact /sum
        p = p * pl.reciprocal(jnp.sum(p, axis=-1, keepdims=True), approx=True)
        ctx_heads.append(jnp.dot(p.astype(jnp.bfloat16), v_bf[:, lo:hi],
                                 preferred_element_type=jnp.float32))
    ctx = jnp.concatenate(ctx_heads, axis=-1)            # [S, H]

    # head concat hits Wo with a single full-depth matmul
    attn_out = jnp.dot(ctx.astype(jnp.bfloat16), wo_ref[0],
                       preferred_element_type=jnp.float32) + bo_ref[0]
    h = _layernorm(attn_out + h, ln1g_ref[0], ln1b_ref[0], eps)

    # ---- feed-forward --------------------------------------------------------
    ff = jnp.dot(h.astype(jnp.bfloat16), w1_ref[0],
                 preferred_element_type=jnp.float32) + b1_ref[0]
    ff = jax.nn.gelu(ff, approximate=True)   # TODO(synk): torch default is exact erf
    ff = jnp.dot(ff.astype(jnp.bfloat16), w2_ref[0],
                 preferred_element_type=jnp.float32) + b2_ref[0]
    h = _layernorm(ff + h, ln2g_ref[0], ln2b_ref[0], eps)

    hid_ref[...] = h.astype(hid_ref.dtype)

    # ---- last layer: pooler (token 0 of this sequence -> dense -> tanh) -----
    @pl.when(layer == n_layers - 1)
    def _():
        first = h[0:1, :].astype(jnp.bfloat16)           # [1, H], no selector matmul
        pooled = jnp.tanh(jnp.dot(first, poolw_ref[...],
                                  preferred_element_type=jnp.float32)
                          + poolb_ref[...])
        pooled_ref[0] = pooled.astype(pooled_ref.dtype)


def bert_fused_call(params, cfg, emb2d, key_bias):
    M, H = emb2d.shape
    B = key_bias.shape[0]
    S = M // B
    L = cfg.num_hidden_layers
    I = cfg.intermediate_size

    kernel = functools.partial(_fused_bert_kernel, cfg.num_attention_heads,
                               cfg.layer_norm_eps)

    def resident(shape):
        nd = len(shape)
        return pl.BlockSpec(tuple(shape), lambda b, l, _n=nd: (0,) * _n)

    def per_seq(tail):
        nd = len(tail)
        return pl.BlockSpec(tuple(tail), lambda b, l, _n=nd: (b,) + (0,) * (_n - 1))

    def per_layer(tail):
        nd = len(tail)
        return pl.BlockSpec((1,) + tuple(tail), lambda b, l, _n=nd: (l,) + (0,) * _n)

    hid, pooled = pl.pallas_call(
        kernel,
        out_shape=(jax.ShapeDtypeStruct((M, H), jnp.float32),
                   jax.ShapeDtypeStruct((B, 1, H), jnp.float32)),
        grid=(B, L),                              # layer axis innermost (carry)
        in_specs=[
            per_seq((S, H)),            # embeddings (this sequence's rows)
            per_seq((1, 1, S)),         # additive key bias row
            resident((1, H)),           # emb LN gamma
            resident((1, H)),           # emb LN beta
            per_layer((3, H, H)),       # Q/K/V weights, split on leading axis
            per_layer((3, 1, H)),       # Q/K/V biases
            per_layer((H, H)),          # attn output weight
            per_layer((1, H)),          # attn output bias
            per_layer((1, H)),          # LN1 gamma
            per_layer((1, H)),          # LN1 beta
            per_layer((H, I)),          # FFN w1
            per_layer((1, I)),          # FFN b1
            per_layer((I, H)),          # FFN w2
            per_layer((1, H)),          # FFN b2
            per_layer((1, H)),          # LN2 gamma
            per_layer((1, H)),          # LN2 beta
            resident((H, H)),           # pooler weight
            resident((1, H)),           # pooler bias
        ],
        out_specs=(per_seq((S, H)),               # hidden states (resident over l)
                   per_seq((1, 1, H))),           # pooled output
        compiler_params=pltpu.CompilerParams(
            dimension_semantics=("parallel", "arbitrary")),
    )(emb2d, key_bias,
      params["emb_ln_g"], params["emb_ln_b"],
      params["wqkv"], params["bqkv"], params["wo"], params["bo"],
      params["ln1_g"], params["ln1_b"],
      params["w1"], params["b1"], params["w2"], params["b2"],
      params["ln2_g"], params["ln2_b"],
      params["pool_w"], params["pool_b"])
    return hid, pooled.reshape(B, H)


# ----------------------------- parameters -----------------------------------
def init_params(cfg, key):
    std = cfg.initializer_range
    H, I, L = cfg.hidden_size, cfg.intermediate_size, cfg.num_hidden_layers
    keys = iter(jax.random.split(key, 32))

    def normal(shape, dtype=jnp.float32):
        return (std * jax.random.normal(next(keys), shape)).astype(dtype)

    p = {}
    # embeddings (gathered in XLA glue; kept f32)
    word = normal((cfg.vocab_size, H))
    p["word_emb"] = word.at[cfg.pad_token_id].set(0.0)     # padding_idx zeroed
    p["pos_emb"] = normal((cfg.max_position_embeddings, H))
    p["type_emb"] = normal((cfg.type_vocab_size, H))
    p["emb_ln_g"] = jnp.ones((1, H), jnp.float32)
    p["emb_ln_b"] = jnp.zeros((1, H), jnp.float32)

    # encoder: matmul weights stacked on a leading layer axis, stored bf16 and
    # pre-transposed as [in, out]; biases / LN params kept f32, broadcast-ready.
    p["wqkv"] = normal((L, 3, H, H), jnp.bfloat16)          # [layer, {q,k,v}, in, out]
    p["bqkv"] = jnp.zeros((L, 3, 1, H), jnp.float32)
    p["wo"] = normal((L, H, H), jnp.bfloat16)
    p["bo"] = jnp.zeros((L, 1, H), jnp.float32)
    p["ln1_g"] = jnp.ones((L, 1, H), jnp.float32)
    p["ln1_b"] = jnp.zeros((L, 1, H), jnp.float32)
    p["w1"] = normal((L, H, I), jnp.bfloat16)
    p["b1"] = jnp.zeros((L, 1, I), jnp.float32)
    p["w2"] = normal((L, I, H), jnp.bfloat16)
    p["b2"] = jnp.zeros((L, 1, H), jnp.float32)
    p["ln2_g"] = jnp.ones((L, 1, H), jnp.float32)
    p["ln2_b"] = jnp.zeros((L, 1, H), jnp.float32)

    # pooler
    p["pool_w"] = normal((H, H), jnp.bfloat16)
    p["pool_b"] = jnp.zeros((1, H), jnp.float32)
    return p


# ----------------------------- model forward --------------------------------
def bert_forward(params, cfg, input_ids, attention_mask=None,
                 token_type_ids=None, position_ids=None):
    B, S = input_ids.shape
    H = cfg.hidden_size
    M = B * S

    if attention_mask is None:
        attention_mask = jnp.ones_like(input_ids)
    if token_type_ids is None:
        token_type_ids = jnp.zeros_like(input_ids)
    if position_ids is None:
        position_ids = jnp.broadcast_to(jnp.arange(S)[None, :], (B, S))

    # Embedding gathers stay as tiny XLA glue; everything else is one kernel.
    emb = (params["word_emb"][input_ids]
           + params["pos_emb"][position_ids]
           + params["type_emb"][token_type_ids]).reshape(M, H).astype(jnp.float32)

    # Additive key bias per sequence (matches the torch extended mask):
    # (1 - mask) * -10000 broadcast over query rows of the [S, S] score block.
    key_bias = ((1.0 - attention_mask.astype(jnp.float32)) * -10000.0
                ).reshape(B, 1, S)

    hid, pooled = bert_fused_call(params, cfg, emb, key_bias)

    return {"last_hidden_state": hid.reshape(B, S, H),
            "pooler_output": pooled,
            "hidden_states": None,
            "attentions": None}


# ----------------------------- main ------------------------------------------
if __name__ == "__main__":
    cfg = Config()
    key = jax.random.PRNGKey(0)
    pkey, ikey = jax.random.split(key)

    params = init_params(cfg, pkey)

    B, S = 2, 8
    input_ids = jax.random.randint(ikey, (B, S), 1, cfg.vocab_size, dtype=jnp.int32)
    # mask out the last two tokens of the second sequence to exercise masking
    attention_mask = jnp.ones((B, S), jnp.int32).at[1, -2:].set(0)
    token_type_ids = jnp.zeros((B, S), jnp.int32).at[:, S // 2:].set(1)

    out = bert_forward(params, cfg, input_ids,
                       attention_mask=attention_mask,
                       token_type_ids=token_type_ids)

    jax.block_until_ready(out["last_hidden_state"])
    jax.block_until_ready(out["pooler_output"])

    assert out["last_hidden_state"].shape == (B, S, cfg.hidden_size)
    assert out["pooler_output"].shape == (B, cfg.hidden_size)
    assert bool(jnp.all(jnp.isfinite(out["last_hidden_state"])))
    assert bool(jnp.all(jnp.isfinite(out["pooler_output"])))
    print("KERNEL_OK")
</pallas_src>

<mosaic_0001>
module attributes {stable_mosaic.version = 11 : i64} {
  func.func @_fused_bert_kernel(%arg0: i32, %arg1: i32, %arg2: memref<8x32xf32, #tpu.memory_space<vmem>>, %arg3: memref<1x1x8xf32, #tpu.memory_space<vmem>>, %arg4: memref<1x32xf32, #tpu.memory_space<vmem>>, %arg5: memref<1x32xf32, #tpu.memory_space<vmem>>, %arg6: memref<1x3x32x32xbf16, #tpu.memory_space<vmem>>, %arg7: memref<1x3x1x32xf32, #tpu.memory_space<vmem>>, %arg8: memref<1x32x32xbf16, #tpu.memory_space<vmem>>, %arg9: memref<1x1x32xf32, #tpu.memory_space<vmem>>, %arg10: memref<1x1x32xf32, #tpu.memory_space<vmem>>, %arg11: memref<1x1x32xf32, #tpu.memory_space<vmem>>, %arg12: memref<1x32x64xbf16, #tpu.memory_space<vmem>>, %arg13: memref<1x1x64xf32, #tpu.memory_space<vmem>>, %arg14: memref<1x64x32xbf16, #tpu.memory_space<vmem>>, %arg15: memref<1x1x32xf32, #tpu.memory_space<vmem>>, %arg16: memref<1x1x32xf32, #tpu.memory_space<vmem>>, %arg17: memref<1x1x32xf32, #tpu.memory_space<vmem>>, %arg18: memref<32x32xbf16, #tpu.memory_space<vmem>>, %arg19: memref<1x32xf32, #tpu.memory_space<vmem>>, %arg20: memref<8x32xf32, #tpu.memory_space<vmem>>, %arg21: memref<1x1x32xf32, #tpu.memory_space<vmem>>) attributes {dimension_semantics = [#tpu.dimension_semantics<parallel>, #tpu.dimension_semantics<arbitrary>], iteration_bounds = array<i64: 2, 2>, scalar_prefetch = 0 : i64, scratch_operands = 0 : i64, tpu.core_type = #tpu.core_type<tc>, window_params = [{transform_indices = @transform_0, window_bounds = array<i64: 8, 32>}, {transform_indices = @transform_1, window_bounds = array<i64: 1, 1, 8>}, {pipeline_mode = #tpu.pipeline_mode<synchronous>, transform_indices = @transform_2, window_bounds = array<i64: 1, 32>}, {pipeline_mode = #tpu.pipeline_mode<synchronous>, transform_indices = @transform_3, window_bounds = array<i64: 1, 32>}, {transform_indices = @transform_4, window_bounds = array<i64: 1, 3, 32, 32>}, {transform_indices = @transform_5, window_bounds = array<i64: 1, 3, 1, 32>}, {transform_indices = @transform_6, window_bounds = array<i64: 1, 32, 32>}, {transform_indices = @transform_7, window_bounds = array<i64: 1, 1, 32>}, {transform_indices = @transform_8, window_bounds = array<i64: 1, 1, 32>}, {transform_indices = @transform_9, window_bounds = array<i64: 1, 1, 32>}, {transform_indices = @transform_10, window_bounds = array<i64: 1, 32, 64>}, {transform_indices = @transform_11, window_bounds = array<i64: 1, 1, 64>}, {transform_indices = @transform_12, window_bounds = array<i64: 1, 64, 32>}, {transform_indices = @transform_13, window_bounds = array<i64: 1, 1, 32>}, {transform_indices = @transform_14, window_bounds = array<i64: 1, 1, 32>}, {transform_indices = @transform_15, window_bounds = array<i64: 1, 1, 32>}, {pipeline_mode = #tpu.pipeline_mode<synchronous>, transform_indices = @transform_16, window_bounds = array<i64: 32, 32>}, {pipeline_mode = #tpu.pipeline_mode<synchronous>, transform_indices = @transform_17, window_bounds = array<i64: 1, 32>}, {transform_indices = @transform_18, window_bounds = array<i64: 8, 32>}, {transform_indices = @transform_19, window_bounds = array<i64: 1, 1, 32>}]} {
    %c0_i32 = arith.constant 0 : i32
    %0 = arith.cmpi eq, %arg1, %c0_i32 : i32
    %1 = arith.extui %0 : i1 to i32
    %c0_i32_0 = arith.constant 0 : i32
    %2 = arith.cmpi ne, %1, %c0_i32_0 : i32
    scf.if %2 {
      %c0_96 = arith.constant 0 : index
      %c0_97 = arith.constant 0 : index
      %207 = vector.load %arg2[%c0_96, %c0_97] : memref<8x32xf32, #tpu.memory_space<vmem>>, vector<8x32xf32>
      %c0_98 = arith.constant 0 : index
      %c0_99 = arith.constant 0 : index
      %208 = vector.load %arg4[%c0_98, %c0_99] : memref<1x32xf32, #tpu.memory_space<vmem>>, vector<1x32xf32>
      %c0_100 = arith.constant 0 : index
      %c0_101 = arith.constant 0 : index
      %209 = vector.load %arg5[%c0_100, %c0_101] : memref<1x32xf32, #tpu.memory_space<vmem>>, vector<1x32xf32>
      %cst_102 = arith.constant dense<0.000000e+00> : vector<8xf32>
      %210 = vector.multi_reduction <add>, %207, %cst_102 [1] : vector<8x32xf32> to vector<8xf32>
      %211 = vector.shape_cast %210 : vector<8xf32> to vector<8x1xf32>
      %cst_103 = arith.constant 3.200000e+01 : f32
      %212 = vector.broadcast %cst_103 : f32 to vector<8x1xf32>
      %213 = arith.divf %211, %212 : vector<8x1xf32>
      %214 = vector.broadcast %213 : vector<8x1xf32> to vector<8x32xf32>
      %215 = arith.subf %207, %214 : vector<8x32xf32>
      %216 = arith.mulf %215, %215 : vector<8x32xf32>
      %cst_104 = arith.constant dense<0.000000e+00> : vector<8xf32>
      %217 = vector.multi_reduction <add>, %216, %cst_104 [1] : vector<8x32xf32> to vector<8xf32>
      %218 = vector.shape_cast %217 : vector<8xf32> to vector<8x1xf32>
      %cst_105 = arith.constant 3.200000e+01 : f32
      %219 = vector.broadcast %cst_105 : f32 to vector<8x1xf32>
      %220 = arith.divf %218, %219 : vector<8x1xf32>
      %cst_106 = arith.constant 9.99999996E-13 : f32
      %221 = vector.broadcast %cst_106 : f32 to vector<8x1xf32>
      %222 = arith.addf %220, %221 : vector<8x1xf32>
      %223 = math.rsqrt %222 : vector<8x1xf32>
      %224 = vector.broadcast %223 : vector<8x1xf32> to vector<8x32xf32>
      %225 = arith.mulf %215, %224 : vector<8x32xf32>
      %226 = vector.broadcast %208 : vector<1x32xf32> to vector<8x32xf32>
      %227 = arith.mulf %225, %226 : vector<8x32xf32>
      %228 = vector.broadcast %209 : vector<1x32xf32> to vector<8x32xf32>
      %229 = arith.addf %227, %228 : vector<8x32xf32>
      %c0_107 = arith.constant 0 : index
      %c0_108 = arith.constant 0 : index
      %230 = vector.load %arg20[%c0_107, %c0_108] : memref<8x32xf32, #tpu.memory_space<vmem>>, vector<8x32xf32>
      tpu.vector_store %arg20[%c0_107, %c0_108], %229 {strides = array<i32>} : memref<8x32xf32, #tpu.memory_space<vmem>>, vector<8x32xf32>,
    } else {
    }
    %c0 = arith.constant 0 : index
    %c0_1 = arith.constant 0 : index
    %3 = vector.load %arg20[%c0, %c0_1] : memref<8x32xf32, #tpu.memory_space<vmem>>, vector<8x32xf32>
    %c0_2 = arith.constant 0 : index
    %c0_3 = arith.constant 0 : index
    %c0_4 = arith.constant 0 : index
    %4 = vector.load %arg3[%c0_2, %c0_3, %c0_4] : memref<1x1x8xf32, #tpu.memory_space<vmem>>, vector<1x1x8xf32>
    %5 = vector.shape_cast %4 : vector<1x1x8xf32> to vector<1x8xf32>
    %6 = arith.truncf %3 : vector<8x32xf32> to vector<8x32xbf16>
    %c0_5 = arith.constant 0 : index
    %c0_6 = arith.constant 0 : index
    %c0_7 = arith.constant 0 : index
    %c0_8 = arith.constant 0 : index
    %7 = vector.load %arg6[%c0_5, %c0_6, %c0_7, %c0_8] : memref<1x3x32x32xbf16, #tpu.memory_space<vmem>>, vector<1x1x32x32xbf16>
    %8 = vector.shape_cast %7 : vector<1x1x32x32xbf16> to vector<32x32xbf16>
    %cst = arith.constant dense<0.000000e+00> : vector<8x32xf32>
    %9 = tpu.matmul %6, %8, %cst {dimension_numbers = #tpu.dot_dimension_numbers<[1], [0], [0], [1], [0, 0, 1, 1], [], []>} : vector<8x32xbf16>, vector<32x32xbf16>, vector<8x32xf32> -> vector<8x32xf32>
    %c0_9 = arith.constant 0 : index
    %c0_10 = arith.constant 0 : index
    %c0_11 = arith.constant 0 : index
    %c0_12 = arith.constant 0 : index
    %10 = vector.load %arg7[%c0_9, %c0_10, %c0_11, %c0_12] : memref<1x3x1x32xf32, #tpu.memory_space<vmem>>, vector<1x1x1x32xf32>
    %11 = vector.shape_cast %10 : vector<1x1x1x32xf32> to vector<1x32xf32>
    %12 = vector.broadcast %11 : vector<1x32xf32> to vector<8x32xf32>
    %13 = arith.addf %9, %12 : vector<8x32xf32>
    %c0_13 = arith.constant 0 : index
    %c1 = arith.constant 1 : index
    %c0_14 = arith.constant 0 : index
    %c0_15 = arith.constant 0 : index
    %14 = vector.load %arg6[%c0_13, %c1, %c0_14, %c0_15] : memref<1x3x32x32xbf16, #tpu.memory_space<vmem>>, vector<1x1x32x32xbf16>
    %15 = vector.shape_cast %14 : vector<1x1x32x32xbf16> to vector<32x32xbf16>
    %cst_16 = arith.constant dense<0.000000e+00> : vector<8x32xf32>
    %16 = tpu.matmul %6, %15, %cst_16 {dimension_numbers = #tpu.dot_dimension_numbers<[1], [0], [0], [1], [0, 0, 1, 1], [], []>} : vector<8x32xbf16>, vector<32x32xbf16>, vector<8x32xf32> -> vector<8x32xf32>
    %c0_17 = arith.constant 0 : index
    %c1_18 = arith.constant 1 : index
    %c0_19 = arith.constant 0 : index
    %c0_20 = arith.constant 0 : index
    %17 = vector.load %arg7[%c0_17, %c1_18, %c0_19, %c0_20] : memref<1x3x1x32xf32, #tpu.memory_space<vmem>>, vector<1x1x1x32xf32>
    %18 = vector.shape_cast %17 : vector<1x1x1x32xf32> to vector<1x32xf32>
    %19 = vector.broadcast %18 : vector<1x32xf32> to vector<8x32xf32>
    %20 = arith.addf %16, %19 : vector<8x32xf32>
    %c0_21 = arith.constant 0 : index
    %c2 = arith.constant 2 : index
    %c0_22 = arith.constant 0 : index
    %c0_23 = arith.constant 0 : index
    %21 = vector.load %arg6[%c0_21, %c2, %c0_22, %c0_23] : memref<1x3x32x32xbf16, #tpu.memory_space<vmem>>, vector<1x1x32x32xbf16>
    %22 = vector.shape_cast %21 : vector<1x1x32x32xbf16> to vector<32x32xbf16>
    %cst_24 = arith.constant dense<0.000000e+00> : vector<8x32xf32>
    %23 = tpu.matmul %6, %22, %cst_24 {dimension_numbers = #tpu.dot_dimension_numbers<[1], [0], [0], [1], [0, 0, 1, 1], [], []>} : vector<8x32xbf16>, vector<32x32xbf16>, vector<8x32xf32> -> vector<8x32xf32>
    %c0_25 = arith.constant 0 : index
    %c2_26 = arith.constant 2 : index
    %c0_27 = arith.constant 0 : index
    %c0_28 = arith.constant 0 : index
    %24 = vector.load %arg7[%c0_25, %c2_26, %c0_27, %c0_28] : memref<1x3x1x32xf32, #tpu.memory_space<vmem>>, vector<1x1x1x32xf32>
    %25 = vector.shape_cast %24 : vector<1x1x1x32xf32> to vector<1x32xf32>
    %26 = vector.broadcast %25 : vector<1x32xf32> to vector<8x32xf32>
    %27 = arith.addf %23, %26 : vector<8x32xf32>
    %cst_29 = arith.constant 0.353553385 : f32
    %28 = vector.broadcast %cst_29 : f32 to vector<8x32xf32>
    %29 = arith.mulf %13, %28 : vector<8x32xf32>
    %30 = arith.truncf %27 : vector<8x32xf32> to vector<8x32xbf16>
    %31 = vector.extract_strided_slice %29 {offsets = [0, 0], sizes = [8, 8], strides = [1, 1]} : vector<8x32xf32> to vector<8x8xf32>
    %32 = arith.truncf %31 : vector<8x8xf32> to vector<8x8xbf16>
    %33 = vector.extract_strided_slice %20 {offsets = [0, 0], sizes = [8, 8], strides = [1, 1]} : vector<8x32xf32> to vector<8x8xf32>
    %34 = tpu.transpose %33, [1, 0] : vector<8x8xf32> -> vector<8x8xf32>
    %35 = arith.truncf %34 : vector<8x8xf32> to vector<8x8xbf16>
    %cst_30 = arith.constant dense<0.000000e+00> : vector<8x8xf32>
    %36 = tpu.matmul %32, %35, %cst_30 {dimension_numbers = #tpu.dot_dimension_numbers<[1], [0], [0], [1], [0, 0, 1, 1], [], []>} : vector<8x8xbf16>, vector<8x8xbf16>, vector<8x8xf32> -> vector<8x8xf32>
    %37 = vector.broadcast %5 : vector<1x8xf32> to vector<8x8xf32>
    %38 = arith.addf %36, %37 : vector<8x8xf32>
    %cst_31 = arith.constant dense<0xFF800000> : vector<8xf32>
    %39 = vector.multi_reduction <maximumf>, %38, %cst_31 [1] : vector<8x8xf32> to vector<8xf32>
    %40 = vector.shape_cast %39 : vector<8xf32> to vector<8x1xf32>
    %41 = vector.broadcast %40 : vector<8x1xf32> to vector<8x8xf32>
    %42 = arith.subf %38, %41 : vector<8x8xf32>
    %43 = math.exp %42 : vector<8x8xf32>
    %cst_32 = arith.constant dense<0.000000e+00> : vector<8xf32>
    %44 = vector.multi_reduction <add>, %43, %cst_32 [1] : vector<8x8xf32> to vector<8xf32>
    %45 = vector.shape_cast %44 : vector<8xf32> to vector<8x1xf32>
    %46 = tpu.reciprocal %45 {approx = true} : vector<8x1xf32> -> vector<8x1xf32>
    %47 = vector.broadcast %46 : vector<8x1xf32> to vector<8x8xf32>
    %48 = arith.mulf %43, %47 : vector<8x8xf32>
    %49 = arith.truncf %48 : vector<8x8xf32> to vector<8x8xbf16>
    %50 = vector.extract_strided_slice %30 {offsets = [0, 0], sizes = [8, 8], strides = [1, 1]} : vector<8x32xbf16> to vector<8x8xbf16>
    %cst_33 = arith.constant dense<0.000000e+00> : vector<8x8xf32>
    %51 = tpu.matmul %49, %50, %cst_33 {dimension_numbers = #tpu.dot_dimension_numbers<[1], [0], [0], [1], [0, 0, 1, 1], [], []>} : vector<8x8xbf16>, vector<8x8xbf16>, vector<8x8xf32> -> vector<8x8xf32>
    %52 = vector.extract_strided_slice %29 {offsets = [0, 8], sizes = [8, 8], strides = [1, 1]} : vector<8x32xf32> to vector<8x8xf32>
    %53 = arith.truncf %52 : vector<8x8xf32> to vector<8x8xbf16>
    %54 = vector.extract_strided_slice %20 {offsets = [0, 8], sizes = [8, 8], strides = [1, 1]} : vector<8x32xf32> to vector<8x8xf32>
    %55 = tpu.transpose %54, [1, 0] : vector<8x8xf32> -> vector<8x8xf32>
    %56 = arith.truncf %55 : vector<8x8xf32> to vector<8x8xbf16>
    %cst_34 = arith.constant dense<0.000000e+00> : vector<8x8xf32>
    %57 = tpu.matmul %53, %56, %cst_34 {dimension_numbers = #tpu.dot_dimension_numbers<[1], [0], [0], [1], [0, 0, 1, 1], [], []>} : vector<8x8xbf16>, vector<8x8xbf16>, vector<8x8xf32> -> vector<8x8xf32>
    %58 = vector.broadcast %5 : vector<1x8xf32> to vector<8x8xf32>
    %59 = arith.addf %57, %58 : vector<8x8xf32>
    %cst_35 = arith.constant dense<0xFF800000> : vector<8xf32>
    %60 = vector.multi_reduction <maximumf>, %59, %cst_35 [1] : vector<8x8xf32> to vector<8xf32>
    %61 = vector.shape_cast %60 : vector<8xf32> to vector<8x1xf32>
    %62 = vector.broadcast %61 : vector<8x1xf32> to vector<8x8xf32>
    %63 = arith.subf %59, %62 : vector<8x8xf32>
    %64 = math.exp %63 : vector<8x8xf32>
    %cst_36 = arith.constant dense<0.000000e+00> : vector<8xf32>
    %65 = vector.multi_reduction <add>, %64, %cst_36 [1] : vector<8x8xf32> to vector<8xf32>
    %66 = vector.shape_cast %65 : vector<8xf32> to vector<8x1xf32>
    %67 = tpu.reciprocal %66 {approx = true} : vector<8x1xf32> -> vector<8x1xf32>
    %68 = vector.broadcast %67 : vector<8x1xf32> to vector<8x8xf32>
    %69 = arith.mulf %64, %68 : vector<8x8xf32>
    %70 = arith.truncf %69 : vector<8x8xf32> to vector<8x8xbf16>
    %71 = vector.extract_strided_slice %30 {offsets = [0, 8], sizes = [8, 8], strides = [1, 1]} : vector<8x32xbf16> to vector<8x8xbf16>
    %cst_37 = arith.constant dense<0.000000e+00> : vector<8x8xf32>
    %72 = tpu.matmul %70, %71, %cst_37 {dimension_numbers = #tpu.dot_dimension_numbers<[1], [0], [0], [1], [0, 0, 1, 1], [], []>} : vector<8x8xbf16>, vector<8x8xbf16>, vector<8x8xf32> -> vector<8x8xf32>
    %73 = vector.extract_strided_slice %29 {offsets = [0, 16], sizes = [8, 8], strides = [1, 1]} : vector<8x32xf32> to vector<8x8xf32>
    %74 = arith.truncf %73 : vector<8x8xf32> to vector<8x8xbf16>
    %75 = vector.extract_strided_slice %20 {offsets = [0, 16], sizes = [8, 8], strides = [1, 1]} : vector<8x32xf32> to vector<8x8xf32>
    %76 = tpu.transpose %75, [1, 0] : vector<8x8xf32> -> vector<8x8xf32>
    %77 = arith.truncf %76 : vector<8x8xf32> to vector<8x8xbf16>
    %cst_38 = arith.constant dense<0.000000e+00> : vector<8x8xf32>
    %78 = tpu.matmul %74, %77, %cst_38 {dimension_numbers = #tpu.dot_dimension_numbers<[1], [0], [0], [1], [0, 0, 1, 1], [], []>} : vector<8x8xbf16>, vector<8x8xbf16>, vector<8x8xf32> -> vector<8x8xf32>
    %79 = vector.broadcast %5 : vector<1x8xf32> to vector<8x8xf32>
    %80 = arith.addf %78, %79 : vector<8x8xf32>
    %cst_39 = arith.constant dense<0xFF800000> : vector<8xf32>
    %81 = vector.multi_reduction <maximumf>, %80, %cst_39 [1] : vector<8x8xf32> to vector<8xf32>
    %82 = vector.shape_cast %81 : vector<8xf32> to vector<8x1xf32>
    %83 = vector.broadcast %82 : vector<8x1xf32> to vector<8x8xf32>
    %84 = arith.subf %80, %83 : vector<8x8xf32>
    %85 = math.exp %84 : vector<8x8xf32>
    %cst_40 = arith.constant dense<0.000000e+00> : vector<8xf32>
    %86 = vector.multi_reduction <add>, %85, %cst_40 [1] : vector<8x8xf32> to vector<8xf32>
    %87 = vector.shape_cast %86 : vector<8xf32> to vector<8x1xf32>
    %88 = tpu.reciprocal %87 {approx = true} : vector<8x1xf32> -> vector<8x1xf32>
    %89 = vector.broadcast %88 : vector<8x1xf32> to vector<8x8xf32>
    %90 = arith.mulf %85, %89 : vector<8x8xf32>
    %91 = arith.truncf %90 : vector<8x8xf32> to vector<8x8xbf16>
    %92 = vector.extract_strided_slice %30 {offsets = [0, 16], sizes = [8, 8], strides = [1, 1]} : vector<8x32xbf16> to vector<8x8xbf16>
    %cst_41 = arith.constant dense<0.000000e+00> : vector<8x8xf32>
    %93 = tpu.matmul %91, %92, %cst_41 {dimension_numbers = #tpu.dot_dimension_numbers<[1], [0], [0], [1], [0, 0, 1, 1], [], []>} : vector<8x8xbf16>, vector<8x8xbf16>, vector<8x8xf32> -> vector<8x8xf32>
    %94 = vector.extract_strided_slice %29 {offsets = [0, 24], sizes = [8, 8], strides = [1, 1]} : vector<8x32xf32> to vector<8x8xf32>
    %95 = arith.truncf %94 : vector<8x8xf32> to vector<8x8xbf16>
    %96 = vector.extract_strided_slice %20 {offsets = [0, 24], sizes = [8, 8], strides = [1, 1]} : vector<8x32xf32> to vector<8x8xf32>
    %97 = tpu.transpose %96, [1, 0] : vector<8x8xf32> -> vector<8x8xf32>
    %98 = arith.truncf %97 : vector<8x8xf32> to vector<8x8xbf16>
    %cst_42 = arith.constant dense<0.000000e+00> : vector<8x8xf32>
    %99 = tpu.matmul %95, %98, %cst_42 {dimension_numbers = #tpu.dot_dimension_numbers<[1], [0], [0], [1], [0, 0, 1, 1], [], []>} : vector<8x8xbf16>, vector<8x8xbf16>, vector<8x8xf32> -> vector<8x8xf32>
    %100 = vector.broadcast %5 : vector<1x8xf32> to vector<8x8xf32>
    %101 = arith.addf %99, %100 : vector<8x8xf32>
    %cst_43 = arith.constant dense<0xFF800000> : vector<8xf32>
    %102 = vector.multi_reduction <maximumf>, %101, %cst_43 [1] : vector<8x8xf32> to vector<8xf32>
    %103 = vector.shape_cast %102 : vector<8xf32> to vector<8x1xf32>
    %104 = vector.broadcast %103 : vector<8x1xf32> to vector<8x8xf32>
    %105 = arith.subf %101, %104 : vector<8x8xf32>
    %106 = math.exp %105 : vector<8x8xf32>
    %cst_44 = arith.constant dense<0.000000e+00> : vector<8xf32>
    %107 = vector.multi_reduction <add>, %106, %cst_44 [1] : vector<8x8xf32> to vector<8xf32>
    %108 = vector.shape_cast %107 : vector<8xf32> to vector<8x1xf32>
    %109 = tpu.reciprocal %108 {approx = true} : vector<8x1xf32> -> vector<8x1xf32>
    %110 = vector.broadcast %109 : vector<8x1xf32> to vector<8x8xf32>
    %111 = arith.mulf %106, %110 : vector<8x8xf32>
    %112 = arith.truncf %111 : vector<8x8xf32> to vector<8x8xbf16>
    %113 = vector.extract_strided_slice %30 {offsets = [0, 24], sizes = [8, 8], strides = [1, 1]} : vector<8x32xbf16> to vector<8x8xbf16>
    %cst_45 = arith.constant dense<0.000000e+00> : vector<8x8xf32>
    %114 = tpu.matmul %112, %113, %cst_45 {dimension_numbers = #tpu.dot_dimension_numbers<[1], [0], [0], [1], [0, 0, 1, 1], [], []>} : vector<8x8xbf16>, vector<8x8xbf16>, vector<8x8xf32> -> vector<8x8xf32>
    %115 = tpu.concatenate %51, %72, %93, %114 in 1 : vector<8x8xf32>, vector<8x8xf32>, vector<8x8xf32>, vector<8x8xf32> -> vector<8x32xf32>
    %116 = arith.truncf %115 : vector<8x32xf32> to vector<8x32xbf16>
    %c0_46 = arith.constant 0 : index
    %c0_47 = arith.constant 0 : index
    %c0_48 = arith.constant 0 : index
    %117 = vector.load %arg8[%c0_46, %c0_47, %c0_48] : memref<1x32x32xbf16, #tpu.memory_space<vmem>>, vector<1x32x32xbf16>
    %118 = vector.shape_cast %117 : vector<1x32x32xbf16> to vector<32x32xbf16>
    %cst_49 = arith.constant dense<0.000000e+00> : vector<8x32xf32>
    %119 = tpu.matmul %116, %118, %cst_49 {dimension_numbers = #tpu.dot_dimension_numbers<[1], [0], [0], [1], [0, 0, 1, 1], [], []>} : vector<8x32xbf16>, vector<32x32xbf16>, vector<8x32xf32> -> vector<8x32xf32>
    %c0_50 = arith.constant 0 : index
    %c0_51 = arith.constant 0 : index
    %c0_52 = arith.constant 0 : index
    %120 = vector.load %arg9[%c0_50, %c0_51, %c0_52] : memref<1x1x32xf32, #tpu.memory_space<vmem>>, vector<1x1x32xf32>
    %121 = vector.shape_cast %120 : vector<1x1x32xf32> to vector<1x32xf32>
    %122 = vector.broadcast %121 : vector<1x32xf32> to vector<8x32xf32>
    %123 = arith.addf %119, %122 : vector<8x32xf32>
    %124 = arith.addf %123, %3 : vector<8x32xf32>
    %c0_53 = arith.constant 0 : index
    %c0_54 = arith.constant 0 : index
    %c0_55 = arith.constant 0 : index
    %125 = vector.load %arg10[%c0_53, %c0_54, %c0_55] : memref<1x1x32xf32, #tpu.memory_space<vmem>>, vector<1x1x32xf32>
    %126 = vector.shape_cast %125 : vector<1x1x32xf32> to vector<1x32xf32>
    %c0_56 = arith.constant 0 : index
    %c0_57 = arith.constant 0 : index
    %c0_58 = arith.constant 0 : index
    %127 = vector.load %arg11[%c0_56, %c0_57, %c0_58] : memref<1x1x32xf32, #tpu.memory_space<vmem>>, vector<1x1x32xf32>
    %128 = vector.shape_cast %127 : vector<1x1x32xf32> to vector<1x32xf32>
    %cst_59 = arith.constant dense<0.000000e+00> : vector<8xf32>
    %129 = vector.multi_reduction <add>, %124, %cst_59 [1] : vector<8x32xf32> to vector<8xf32>
    %130 = vector.shape_cast %129 : vector<8xf32> to vector<8x1xf32>
    %cst_60 = arith.constant 3.200000e+01 : f32
    %131 = vector.broadcast %cst_60 : f32 to vector<8x1xf32>
    %132 = arith.divf %130, %131 : vector<8x1xf32>
    %133 = vector.broadcast %132 : vector<8x1xf32> to vector<8x32xf32>
    %134 = arith.subf %124, %133 : vector<8x32xf32>
    %135 = arith.mulf %134, %134 : vector<8x32xf32>
    %cst_61 = arith.constant dense<0.000000e+00> : vector<8xf32>
    %136 = vector.multi_reduction <add>, %135, %cst_61 [1] : vector<8x32xf32> to vector<8xf32>
    %137 = vector.shape_cast %136 : vector<8xf32> to vector<8x1xf32>
    %cst_62 = arith.constant 3.200000e+01 : f32
    %138 = vector.broadcast %cst_62 : f32 to vector<8x1xf32>
    %139 = arith.divf %137, %138 : vector<8x1xf32>
    %cst_63 = arith.constant 9.99999996E-13 : f32
    %140 = vector.broadcast %cst_63 : f32 to vector<8x1xf32>
    %141 = arith.addf %139, %140 : vector<8x1xf32>
    %142 = math.rsqrt %141 : vector<8x1xf32>
    %143 = vector.broadcast %142 : vector<8x1xf32> to vector<8x32xf32>
    %144 = arith.mulf %134, %143 : vector<8x32xf32>
    %145 = vector.broadcast %126 : vector<1x32xf32> to vector<8x32xf32>
    %146 = arith.mulf %144, %145 : vector<8x32xf32>
    %147 = vector.broadcast %128 : vector<1x32xf32> to vector<8x32xf32>
    %148 = arith.addf %146, %147 : vector<8x32xf32>
    %149 = arith.truncf %148 : vector<8x32xf32> to vector<8x32xbf16>
    %c0_64 = arith.constant 0 : index
    %c0_65 = arith.constant 0 : index
    %c0_66 = arith.constant 0 : index
    %150 = vector.load %arg12[%c0_64, %c0_65, %c0_66] : memref<1x32x64xbf16, #tpu.memory_space<vmem>>, vector<1x32x64xbf16>
    %151 = vector.shape_cast %150 : vector<1x32x64xbf16> to vector<32x64xbf16>
    %cst_67 = arith.constant dense<0.000000e+00> : vector<8x64xf32>
    %152 = tpu.matmul %149, %151, %cst_67 {dimension_numbers = #tpu.dot_dimension_numbers<[1], [0], [0], [1], [0, 0, 1, 1], [], []>} : vector<8x32xbf16>, vector<32x64xbf16>, vector<8x64xf32> -> vector<8x64xf32>
    %c0_68 = arith.constant 0 : index
    %c0_69 = arith.constant 0 : index
    %c0_70 = arith.constant 0 : index
    %153 = vector.load %arg13[%c0_68, %c0_69, %c0_70] : memref<1x1x64xf32, #tpu.memory_space<vmem>>, vector<1x1x64xf32>
    %154 = vector.shape_cast %153 : vector<1x1x64xf32> to vector<1x64xf32>
    %155 = vector.broadcast %154 : vector<1x64xf32> to vector<8x64xf32>
    %156 = arith.addf %152, %155 : vector<8x64xf32>
    %157 = arith.mulf %156, %156 : vector<8x64xf32>
    %158 = arith.mulf %156, %157 : vector<8x64xf32>
    %cst_71 = arith.constant 4.471500e-02 : f32
    %159 = vector.broadcast %cst_71 : f32 to vector<8x64xf32>
    %160 = arith.mulf %159, %158 : vector<8x64xf32>
    %161 = arith.addf %156, %160 : vector<8x64xf32>
    %cst_72 = arith.constant 0.797884583 : f32
    %162 = vector.broadcast %cst_72 : f32 to vector<8x64xf32>
    %163 = arith.mulf %162, %161 : vector<8x64xf32>
    %164 = math.tanh %163 : vector<8x64xf32>
    %cst_73 = arith.constant 1.000000e+00 : f32
    %165 = vector.broadcast %cst_73 : f32 to vector<8x64xf32>
    %166 = arith.addf %165, %164 : vector<8x64xf32>
    %cst_74 = arith.constant 5.000000e-01 : f32
    %167 = vector.broadcast %cst_74 : f32 to vector<8x64xf32>
    %168 = arith.mulf %167, %166 : vector<8x64xf32>
    %169 = arith.mulf %156, %168 : vector<8x64xf32>
    %170 = arith.truncf %169 : vector<8x64xf32> to vector<8x64xbf16>
    %c0_75 = arith.constant 0 : index
    %c0_76 = arith.constant 0 : index
    %c0_77 = arith.constant 0 : index
    %171 = vector.load %arg14[%c0_75, %c0_76, %c0_77] : memref<1x64x32xbf16, #tpu.memory_space<vmem>>, vector<1x64x32xbf16>
    %172 = vector.shape_cast %171 : vector<1x64x32xbf16> to vector<64x32xbf16>
    %cst_78 = arith.constant dense<0.000000e+00> : vector<8x32xf32>
    %173 = tpu.matmul %170, %172, %cst_78 {dimension_numbers = #tpu.dot_dimension_numbers<[1], [0], [0], [1], [0, 0, 1, 1], [], []>} : vector<8x64xbf16>, vector<64x32xbf16>, vector<8x32xf32> -> vector<8x32xf32>
    %c0_79 = arith.constant 0 : index
    %c0_80 = arith.constant 0 : index
    %c0_81 = arith.constant 0 : index
    %174 = vector.load %arg15[%c0_79, %c0_80, %c0_81] : memref<1x1x32xf32, #tpu.memory_space<vmem>>, vector<1x1x32xf32>
    %175 = vector.shape_cast %174 : vector<1x1x32xf32> to vector<1x32xf32>
    %176 = vector.broadcast %175 : vector<1x32xf32> to vector<8x32xf32>
    %177 = arith.addf %173, %176 : vector<8x32xf32>
    %178 = arith.addf %177, %148 : vector<8x32xf32>
    %c0_82 = arith.constant 0 : index
    %c0_83 = arith.constant 0 : index
    %c0_84 = arith.constant 0 : index
    %179 = vector.load %arg16[%c0_82, %c0_83, %c0_84] : memref<1x1x32xf32, #tpu.memory_space<vmem>>, vector<1x1x32xf32>
    %180 = vector.shape_cast %179 : vector<1x1x32xf32> to vector<1x32xf32>
    %c0_85 = arith.constant 0 : index
    %c0_86 = arith.constant 0 : index
    %c0_87 = arith.constant 0 : index
    %181 = vector.load %arg17[%c0_85, %c0_86, %c0_87] : memref<1x1x32xf32, #tpu.memory_space<vmem>>, vector<1x1x32xf32>
    %182 = vector.shape_cast %181 : vector<1x1x32xf32> to vector<1x32xf32>
    %cst_88 = arith.constant dense<0.000000e+00> : vector<8xf32>
    %183 = vector.multi_reduction <add>, %178, %cst_88 [1] : vector<8x32xf32> to vector<8xf32>
    %184 = vector.shape_cast %183 : vector<8xf32> to vector<8x1xf32>
    %cst_89 = arith.constant 3.200000e+01 : f32
    %185 = vector.broadcast %cst_89 : f32 to vector<8x1xf32>
    %186 = arith.divf %184, %185 : vector<8x1xf32>
    %187 = vector.broadcast %186 : vector<8x1xf32> to vector<8x32xf32>
    %188 = arith.subf %178, %187 : vector<8x32xf32>
    %189 = arith.mulf %188, %188 : vector<8x32xf32>
    %cst_90 = arith.constant dense<0.000000e+00> : vector<8xf32>
    %190 = vector.multi_reduction <add>, %189, %cst_90 [1] : vector<8x32xf32> to vector<8xf32>
    %191 = vector.shape_cast %190 : vector<8xf32> to vector<8x1xf32>
    %cst_91 = arith.constant 3.200000e+01 : f32
    %192 = vector.broadcast %cst_91 : f32 to vector<8x1xf32>
    %193 = arith.divf %191, %192 : vector<8x1xf32>
    %cst_92 = arith.constant 9.99999996E-13 : f32
    %194 = vector.broadcast %cst_92 : f32 to vector<8x1xf32>
    %195 = arith.addf %193, %194 : vector<8x1xf32>
    %196 = math.rsqrt %195 : vector<8x1xf32>
    %197 = vector.broadcast %196 : vector<8x1xf32> to vector<8x32xf32>
    %198 = arith.mulf %188, %197 : vector<8x32xf32>
    %199 = vector.broadcast %180 : vector<1x32xf32> to vector<8x32xf32>
    %200 = arith.mulf %198, %199 : vector<8x32xf32>
    %201 = vector.broadcast %182 : vector<1x32xf32> to vector<8x32xf32>
    %202 = arith.addf %200, %201 : vector<8x32xf32>
    %c0_93 = arith.constant 0 : index
    %c0_94 = arith.constant 0 : index
    %203 = vector.load %arg20[%c0_93, %c0_94] : memref<8x32xf32, #tpu.memory_space<vmem>>, vector<8x32xf32>
    tpu.vector_store %arg20[%c0_93, %c0_94], %202 {strides = array<i32>} : memref<8x32xf32, #tpu.memory_space<vmem>>, vector<8x32xf32>,
    %c1_i32 = arith.constant 1 : i32
    %204 = arith.cmpi eq, %arg1, %c1_i32 : i32
    %205 = arith.extui %204 : i1 to i32
    %c0_i32_95 = arith.constant 0 : i32
    %206 = arith.cmpi ne, %205, %c0_i32_95 : i32
    scf.if %206 {
      %207 = vector.extract_strided_slice %202 {offsets = [0, 0], sizes = [1, 32], strides = [1, 1]} : vector<8x32xf32> to vector<1x32xf32>
      %208 = arith.truncf %207 : vector<1x32xf32> to vector<1x32xbf16>
      %c0_96 = arith.constant 0 : index
      %c0_97 = arith.constant 0 : index
      %209 = vector.load %arg18[%c0_96, %c0_97] : memref<32x32xbf16, #tpu.memory_space<vmem>>, vector<32x32xbf16>
      %cst_98 = arith.constant dense<0.000000e+00> : vector<1x32xf32>
      %210 = tpu.matmul %208, %209, %cst_98 {dimension_numbers = #tpu.dot_dimension_numbers<[1], [0], [0], [1], [0, 0, 1, 1], [], []>} : vector<1x32xbf16>, vector<32x32xbf16>, vector<1x32xf32> -> vector<1x32xf32>
      %c0_99 = arith.constant 0 : index
      %c0_100 = arith.constant 0 : index
      %211 = vector.load %arg19[%c0_99, %c0_100] : memref<1x32xf32, #tpu.memory_space<vmem>>, vector<1x32xf32>
      %212 = arith.addf %210, %211 : vector<1x32xf32>
      %213 = math.tanh %212 : vector<1x32xf32>
      %c0_101 = arith.constant 0 : index
      %c0_102 = arith.constant 0 : index
      %c0_103 = arith.constant 0 : index
      %214 = vector.load %arg21[%c0_101, %c0_102, %c0_103] : memref<1x1x32xf32, #tpu.memory_space<vmem>>, vector<1x1x32xf32>
      %215 = vector.shape_cast %214 : vector<1x1x32xf32> to vector<1x32xf32>
      %216 = vector.shape_cast %213 : vector<1x32xf32> to vector<1x1x32xf32>
      tpu.vector_store %arg21[%c0_101, %c0_102, %c0_103], %216 {strides = array<i32>} : memref<1x1x32xf32, #tpu.memory_space<vmem>>, vector<1x1x32xf32>,
    } else {
    }
    return
  }
  func.func @transform_0(%arg0: i32, %arg1: i32) -> (i32, i32) {
    %c0_i32 = arith.constant 0 : i32
    %c0_i32_0 = arith.constant 0 : i32
    return %arg0, %c0_i32 : i32, i32
  }
  func.func @transform_1(%arg0: i32, %arg1: i32) -> (i32, i32, i32) {
    %c0_i32 = arith.constant 0 : i32
    %c0_i32_0 = arith.constant 0 : i32
    %c0_i32_1 = arith.constant 0 : i32
    return %arg0, %c0_i32, %c0_i32_0 : i32, i32, i32
  }
  func.func @transform_2(%arg0: i32, %arg1: i32) -> (i32, i32) {
    %c0_i32 = arith.constant 0 : i32
    %c0_i32_0 = arith.constant 0 : i32
    %c0_i32_1 = arith.constant 0 : i32
    return %c0_i32, %c0_i32_0 : i32, i32
  }
  func.func @transform_3(%arg0: i32, %arg1: i32) -> (i32, i32) {
    %c0_i32 = arith.constant 0 : i32
    %c0_i32_0 = arith.constant 0 : i32
    %c0_i32_1 = arith.constant 0 : i32
    return %c0_i32, %c0_i32_0 : i32, i32
  }
  func.func @transform_4(%arg0: i32, %arg1: i32) -> (i32, i32, i32, i32) {
    %c0_i32 = arith.constant 0 : i32
    %c0_i32_0 = arith.constant 0 : i32
    %c0_i32_1 = arith.constant 0 : i32
    %c0_i32_2 = arith.constant 0 : i32
    return %arg1, %c0_i32, %c0_i32_0, %c0_i32_1 : i32, i32, i32, i32
  }
  func.func @transform_5(%arg0: i32, %arg1: i32) -> (i32, i32, i32, i32) {
    %c0_i32 = arith.constant 0 : i32
    %c0_i32_0 = arith.constant 0 : i32
    %c0_i32_1 = arith.constant 0 : i32
    %c0_i32_2 = arith.constant 0 : i32
    return %arg1, %c0_i32, %c0_i32_0, %c0_i32_1 : i32, i32, i32, i32
  }
  func.func @transform_6(%arg0: i32, %arg1: i32) -> (i32, i32, i32) {
    %c0_i32 = arith.constant 0 : i32
    %c0_i32_0 = arith.constant 0 : i32
    %c0_i32_1 = arith.constant 0 : i32
    return %arg1, %c0_i32, %c0_i32_0 : i32, i32, i32
  }
  func.func @transform_7(%arg0: i32, %arg1: i32) -> (i32, i32, i32) {
    %c0_i32 = arith.constant 0 : i32
    %c0_i32_0 = arith.constant 0 : i32
    %c0_i32_1 = arith.constant 0 : i32
    return %arg1, %c0_i32, %c0_i32_0 : i32, i32, i32
  }
  func.func @transform_8(%arg0: i32, %arg1: i32) -> (i32, i32, i32) {
    %c0_i32 = arith.constant 0 : i32
    %c0_i32_0 = arith.constant 0 : i32
    %c0_i32_1 = arith.constant 0 : i32
    return %arg1, %c0_i32, %c0_i32_0 : i32, i32, i32
  }
  func.func @transform_9(%arg0: i32, %arg1: i32) -> (i32, i32, i32) {
    %c0_i32 = arith.constant 0 : i32
    %c0_i32_0 = arith.constant 0 : i32
    %c0_i32_1 = arith.constant 0 : i32
    return %arg1, %c0_i32, %c0_i32_0 : i32, i32, i32
  }
  func.func @transform_10(%arg0: i32, %arg1: i32) -> (i32, i32, i32) {
    %c0_i32 = arith.constant 0 : i32
    %c0_i32_0 = arith.constant 0 : i32
    %c0_i32_1 = arith.constant 0 : i32
    return %arg1, %c0_i32, %c0_i32_0 : i32, i32, i32
  }
  func.func @transform_11(%arg0: i32, %arg1: i32) -> (i32, i32, i32) {
    %c0_i32 = arith.constant 0 : i32
    %c0_i32_0 = arith.constant 0 : i32
    %c0_i32_1 = arith.constant 0 : i32
    return %arg1, %c0_i32, %c0_i32_0 : i32, i32, i32
  }
  func.func @transform_12(%arg0: i32, %arg1: i32) -> (i32, i32, i32) {
    %c0_i32 = arith.constant 0 : i32
    %c0_i32_0 = arith.constant 0 : i32
    %c0_i32_1 = arith.constant 0 : i32
    return %arg1, %c0_i32, %c0_i32_0 : i32, i32, i32
  }
  func.func @transform_13(%arg0: i32, %arg1: i32) -> (i32, i32, i32) {
    %c0_i32 = arith.constant 0 : i32
    %c0_i32_0 = arith.constant 0 : i32
    %c0_i32_1 = arith.constant 0 : i32
    return %arg1, %c0_i32, %c0_i32_0 : i32, i32, i32
  }
  func.func @transform_14(%arg0: i32, %arg1: i32) -> (i32, i32, i32) {
    %c0_i32 = arith.constant 0 : i32
    %c0_i32_0 = arith.constant 0 : i32
    %c0_i32_1 = arith.constant 0 : i32
    return %arg1, %c0_i32, %c0_i32_0 : i32, i32, i32
  }
  func.func @transform_15(%arg0: i32, %arg1: i32) -> (i32, i32, i32) {
    %c0_i32 = arith.constant 0 : i32
    %c0_i32_0 = arith.constant 0 : i32
    %c0_i32_1 = arith.constant 0 : i32
    return %arg1, %c0_i32, %c0_i32_0 : i32, i32, i32
  }
  func.func @transform_16(%arg0: i32, %arg1: i32) -> (i32, i32) {
    %c0_i32 = arith.constant 0 : i32
    %c0_i32_0 = arith.constant 0 : i32
    %c0_i32_1 = arith.constant 0 : i32
    return %c0_i32, %c0_i32_0 : i32, i32
  }
  func.func @transform_17(%arg0: i32, %arg1: i32) -> (i32, i32) {
    %c0_i32 = arith.constant 0 : i32
    %c0_i32_0 = arith.constant 0 : i32
    %c0_i32_1 = arith.constant 0 : i32
    return %c0_i32, %c0_i32_0 : i32, i32
  }
  func.func @transform_18(%arg0: i32, %arg1: i32) -> (i32, i32) {
    %c0_i32 = arith.constant 0 : i32
    %c0_i32_0 = arith.constant 0 : i32
    return %arg0, %c0_i32 : i32, i32
  }
  func.func @transform_19(%arg0: i32, %arg1: i32) -> (i32, i32, i32) {
    %c0_i32 = arith.constant 0 : i32
    %c0_i32_0 = arith.constant 0 : i32
    %c0_i32_1 = arith.constant 0 : i32
    return %arg0, %c0_i32, %c0_i32_0 : i32, i32, i32
  }
}

</mosaic_0001>

<llo_original>
// kernel: tpu_custom_call.1
$region0: #{tpu_custom_call.1}
  #allocation0 [shape = 'u32[]', space=smem, size = 0x4, offset = 0x4, fixed_abs, tag = 'smem constant byte address 0x4 - core index']
  #allocation1 [shape = 'u32[144,128]{1,0:T(1,128)}', space=vmem, size = 0x12000, scoped, tag = 'internal scratch']
  %s0 = inlined_call_operand.hbm [shape: f32[16,32], index: 0, kind: input, shape index: {}]
  %s1 = inlined_call_operand.hbm [shape: f32[2,1,8], index: 1, kind: input, shape index: {}]
  %s2 = inlined_call_operand.vmem [shape: f32[1,32], index: 2, kind: input, shape index: {}]
  %s3 = inlined_call_operand.hbm [shape: f32[1,32], index: 3, kind: input, shape index: {}]
  %s4 = inlined_call_operand.vmem [shape: bf16[2,3,32,32], index: 4, kind: input, shape index: {}]
  %s5 = inlined_call_operand.hbm [shape: f32[2,3,1,32], index: 5, kind: input, shape index: {}]
  %s6 = inlined_call_operand.hbm [shape: bf16[2,32,32], index: 6, kind: input, shape index: {}]
  %s7 = inlined_call_operand.hbm [shape: f32[2,1,32], index: 7, kind: input, shape index: {}]
  %s8 = inlined_call_operand.hbm [shape: f32[2,1,32], index: 8, kind: input, shape index: {}]
  %s9 = inlined_call_operand.hbm [shape: f32[2,1,32], index: 9, kind: input, shape index: {}]
  %s10 = inlined_call_operand.hbm [shape: bf16[2,32,64], index: 10, kind: input, shape index: {}]
  %s11 = inlined_call_operand.hbm [shape: f32[2,1,64], index: 11, kind: input, shape index: {}]
  %s12 = inlined_call_operand.vmem [shape: bf16[2,64,32], index: 12, kind: input, shape index: {}]
  %s13 = inlined_call_operand.hbm [shape: f32[2,1,32], index: 13, kind: input, shape index: {}]
  %s14 = inlined_call_operand.vmem [shape: f32[2,1,32], index: 14, kind: input, shape index: {}]
  %s15 = inlined_call_operand.vmem [shape: f32[2,1,32], index: 15, kind: input, shape index: {}]
  %s16 = inlined_call_operand.vmem [shape: bf16[32,32], index: 16, kind: input, shape index: {}]
  %s17 = inlined_call_operand.vmem [shape: f32[1,32], index: 17, kind: input, shape index: {}]
  %s18 = inlined_call_operand.hbm [shape: f32[16,32], index: 18, kind: output, shape index: {0}]
  %s19 = inlined_call_operand.hbm [shape: f32[2,1,32], index: 19, kind: output, shape index: {1}]
  %20 = xla_tuple %s18, %s19
  %s21 = sld [smem:[#allocation0]]
  $region165: #{tpu_custom_call.1} parent=0
    _
  %s23 = ssub.s32 1, %s21
  %s24 = scalar_select 0, %s23, %s21
  $region1: #{tpu_custom_call.1} parent=0
    #allocation2 [shape = 'u8[8192]{0}', space=vmem, size = 0x2000, scoped, tag = 'input window, operand 0']
    #allocation3 [shape = 's32[2]{0}', space=sflag, size = 0x8, scoped, tag = 'scoped memory for tpu_custom_call.1']
    #allocation4 [shape = 's32[2]{0}', space=sflag, size = 0x8, scoped, tag = 'scoped memory for tpu_custom_call.1']
    #allocation5 [shape = 'u8[1024]{0}', space=vmem, size = 0x400, scoped, tag = 'input window, operand 1']
    #allocation6 [shape = 's32[2]{0}', space=sflag, size = 0x8, scoped, tag = 'scoped memory for tpu_custom_call.1']
    #allocation7 [shape = 'u8[512]{0}', space=vmem, size = 0x400, scoped, tag = 'input window, operand 3, single buffered']
    #allocation8 [shape = 'u8[3072]{0}', space=vmem, size = 0xc00, scoped, tag = 'input window, operand 5']
    #allocation9 [shape = 's32[2]{0}', space=sflag, size = 0x8, scoped, tag = 'scoped memory for tpu_custom_call.1']
    #allocation10 [shape = 'u8[16384]{0}', space=vmem, size = 0x4000, scoped, tag = 'input window, operand 6']
    #allocation11 [shape = 'u8[1024]{0}', space=vmem, size = 0x400, scoped, tag = 'input window, operand 7']
    #allocation12 [shape = 's32[2]{0}', space=sflag, size = 0x8, scoped, tag = 'scoped memory for tpu_custom_call.1']
    #allocation13 [shape = 'u8[1024]{0}', space=vmem, size = 0x400, scoped, tag = 'input window, operand 8']
    #allocation14 [shape = 'u8[1024]{0}', space=vmem, size = 0x400, scoped, tag = 'input window, operand 9']
    #allocation15 [shape = 's32[2]{0}', space=sflag, size = 0x8, scoped, tag = 'scoped memory for tpu_custom_call.1']
    #allocation16 [shape = 'u8[16384]{0}', space=vmem, size = 0x4000, scoped, tag = 'input window, operand 10']
    #allocation17 [shape = 'u8[1024]{0}', space=vmem, size = 0x400, scoped, tag = 'input window, operand 11']
    #allocation18 [shape = 's32[2]{0}', space=sflag, size = 0x8, scoped, tag = 'scoped memory for tpu_custom_call.1']
    #allocation19 [shape = 'u8[1024]{0}', space=vmem, size = 0x400, scoped, tag = 'input window, operand 13']
    #allocation20 [shape = 'u8[8192]{0}', space=vmem, size = 0x2000, scoped, tag = 'output window, operand 0']
    #allocation21 [shape = 'u8[1024]{0}', space=vmem, size = 0x400, scoped, tag = 'output window, operand 1']
    #allocation22 [shape = 's32[2]{0}', space=sflag, size = 0x8, scoped, tag = 'scoped memory for tpu_custom_call.1']
    %25 = vsyncpa [#allocation3], 0
    %s26 = scalar_lea.sflag [#allocation3], 1
    %27 = vsyncpa %s26, 0
    %28 = vsyncpa [#allocation6], 0
    %s29 = scalar_lea.sflag [#allocation6], 1
    %30 = vsyncpa %s29, 0
    %31 = vsyncpa [#allocation9], 0
    %s32 = scalar_lea.sflag [#allocation9], 1
    %33 = vsyncpa %s32, 0
    %34 = vsyncpa [#allocation12], 0
    %s35 = scalar_lea.sflag [#allocation12], 1
    %36 = vsyncpa %s35, 0
    %37 = vsyncpa [#allocation15], 0
    %s38 = scalar_lea.sflag [#allocation15], 1
    %39 = vsyncpa %s38, 0
    %40 = vsyncpa [#allocation18], 0
    %s41 = scalar_lea.sflag [#allocation18], 1
    %42 = vsyncpa %s41, 0
    %43 = vsyncpa [#allocation4], 0
    %s44 = scalar_lea.sflag [#allocation4], 1
    %45 = vsyncpa %s44, 0
    %46 = vsyncpa [#allocation22], 0
    %s47 = scalar_lea.sflag [#allocation22], 1
    %48 = vsyncpa %s47, 0
    loop: start=0, step=1, limit=6
    $region2: #{tpu_custom_call.1} parent=1 // loop_pre_header
      _
    $region3: #{tpu_custom_call.1} parent=1 // loop_header
      %s50 = sphi 0, %s54
      %p51 = scmp.ge.s32.totalorder %s50, 6
      %s57 = sphi 0, %s69
      %s58 = sphi 0, %s65
      %s59 = sphi 0, %s57
      %s60 = sphi 0, %s58
      %s61 = sphi 0, %s59
      %s62 = sphi 0, %s60
      %s72 = sphi 0, %s74
      %s75 = sphi 0, %s72
      %s76 = sphi 0, %s75
      %s92 = sphi 0, %s76
      %s98 = sphi 0, %s100
      %s101 = sphi 0, %s98
      %s102 = sphi 0, %s101
      %s118 = sphi 0, %s102
      %s122 = sphi 0, %s122
      %s124 = sphi 0, %s122
      %s125 = sphi 0, %s124
      %s139 = sphi 0, %s125
      %s143 = sphi 0, %s143
      %s145 = sphi 0, %s143
      %s146 = sphi 0, %s145
      %s160 = sphi 0, %s146
      %s166 = sphi 0, %s168
      %s169 = sphi 0, %s166
      %s170 = sphi 0, %s169
      %s186 = sphi 0, %s170
      %s192 = sphi 0, %s194
      %s195 = sphi 0, %s192
      %s196 = sphi 0, %s195
      %s212 = sphi 0, %s196
      %s218 = sphi 0, %s220
      %s221 = sphi 0, %s218
      %s222 = sphi 0, %s221
      %s238 = sphi 0, %s222
      %s244 = sphi 0, %s246
      %s247 = sphi 0, %s244
      %s248 = sphi 0, %s247
      %s264 = sphi 0, %s248
      %s270 = sphi 0, %s272
      %s273 = sphi 0, %s270
      %s274 = sphi 0, %s273
      %s290 = sphi 0, %s274
      %s296 = sphi 0, %s298
      %s299 = sphi 0, %s296
      %s300 = sphi 0, %s299
      %s316 = sphi 0, %s300
      %s322 = sphi 0, %s324
      %s325 = sphi 0, %s322
      %s326 = sphi 0, %s325
      %s342 = sphi 0, %s326
      %s348 = sphi 0, %s350
      %s351 = sphi 0, %s348
      %s352 = sphi 0, %s351
      %s368 = sphi 0, %s352
      %s374 = sphi 0, %s376
      %s377 = sphi 0, %s374
      %s378 = sphi 0, %s377
      %s394 = sphi 0, %s378
      %s400 = sphi 0, %s402
      %s403 = sphi 0, %s400
      %s404 = sphi 0, %s403
      %s420 = sphi 0, %s404
      %s426 = sphi 0, %s428
      %s429 = sphi 0, %s426
      %s430 = sphi 0, %s429
      %s446 = sphi 0, %s430
      %s452 = sphi 0, %s454
      %s455 = sphi 0, %s452
      %s456 = sphi 0, %s455
      %s472 = sphi 0, %s456
      %s476 = sphi 0, %s476
      %s478 = sphi 0, %s476
      %s479 = sphi 0, %s478
      %s493 = sphi 0, %s479
      %s497 = sphi 0, %s497
      %s499 = sphi 0, %s497
      %s500 = sphi 0, %s499
      %s514 = sphi 0, %s500
      %s520 = sphi 0, %s522
      %s523 = sphi 0, %s520
      %s524 = sphi 0, %s523
      %s540 = sphi 0, %s524
      %s546 = sphi 0, %s548
      %s549 = sphi 0, %s546
      %s550 = sphi 0, %s549
      %s566 = sphi 0, %s550
    $region4: #{tpu_custom_call.1} parent=1 // loop_header_branch
      %53 = sbr.rel (%p51) target = $region8
    $region5: #{tpu_custom_call.1} parent=1 // loop_body
      %s55 = ssub.s32 %s50, 1
      %s56 = ssub.s32 %s50, 2
      %s63 = sadd.s32 1, %s58
      %p64 = scmp.ge.s32.totalorder %s63, 2
      %s65 = scalar_select %p64, 0, %s63
      %s66 = sadd.s32 1, %s57
      %s67 = scalar_select %p64, %s66, %s57
      %p68 = scmp.ge.s32.totalorder %s67, 2
      %s69 = scalar_select %p68, 0, %s67
      %s70 = ssub.s32 %s57, %s69
      %p71 = scmp.eq.s32.totalorder %s70, 0
      %s73 = sadd.s32 %s72, 1
      %s74 = scalar_select %p71, %s72, %s73
      %p77 = pneg %p71
      %p78 = scmp.eq.s32.totalorder %s50, 3
      %p79 = por %p77, %p78
      %p80 = scmp.ne.s32.totalorder %s72, %s75
      %p81 = scmp.eq.s32.totalorder %s50, 0
      %p82 = por %p80, %p81
      %p83 = scmp.ne.s32.totalorder %s72, %s75
      %p84 = scmp.eq.s32.totalorder %s55, 3
      %p85 = por %p83, %p84
      %p86 = scmp.ne.s32.totalorder %s75, %s76
      %p87 = scmp.eq.s32.totalorder %s55, 0
      %p88 = por %p86, %p87
      %p89 = scmp.ne.s32.totalorder %s75, %s76
      %p90 = scmp.eq.s32.totalorder %s56, 3
      %p91 = por %p89, %p90
      %p93 = scmp.ne.s32.totalorder %s76, %s92
      %p94 = scmp.eq.s32.totalorder %s56, 0
      %p95 = por %p93, %p94
      %s96 = ssub.s32 %s57, %s69
      %p97 = scmp.eq.s32.totalorder %s96, 0
      %s99 = sadd.s32 %s98, 1
      %s100 = scalar_select %p97, %s98, %s99
      %p103 = pneg %p97
      %p104 = scmp.eq.s32.totalorder %s50, 3
      %p105 = por %p103, %p104
      %p106 = scmp.ne.s32.totalorder %s98, %s101
      %p107 = scmp.eq.s32.totalorder %s50, 0
      %p108 = por %p106, %p107
      %p109 = scmp.ne.s32.totalorder %s98, %s101
      %p110 = scmp.eq.s32.totalorder %s55, 3
      %p111 = por %p109, %p110
      %p112 = scmp.ne.s32.totalorder %s101, %s102
      %p113 = scmp.eq.s32.totalorder %s55, 0
      %p114 = por %p112, %p113
      %p115 = scmp.ne.s32.totalorder %s101, %s102
      %p116 = scmp.eq.s32.totalorder %s56, 3
      %p117 = por %p115, %p116
      %p119 = scmp.ne.s32.totalorder %s102, %s118
      %p120 = scmp.eq.s32.totalorder %s56, 0
      %p121 = por %p119, %p120
      %s123 = sadd.s32 %s122, 1
      %p126 = scmp.eq.s32.totalorder %s50, 3
      %p127 = scmp.ne.s32.totalorder %s122, %s124
      %p128 = scmp.eq.s32.totalorder %s50, 0
      %p129 = por %p127, %p128
      %p130 = scmp.ne.s32.totalorder %s122, %s124
      %p131 = scmp.eq.s32.totalorder %s55, 3
      %p132 = por %p130, %p131
      %p133 = scmp.ne.s32.totalorder %s124, %s125
      %p134 = scmp.eq.s32.totalorder %s55, 0
      %p135 = por %p133, %p134
      %p136 = scmp.ne.s32.totalorder %s124, %s125
      %p137 = scmp.eq.s32.totalorder %s56, 3
      %p138 = por %p136, %p137
      %p140 = scmp.ne.s32.totalorder %s125, %s139
      %p141 = scmp.eq.s32.totalorder %s56, 0
      %p142 = por %p140, %p141
      %s144 = sadd.s32 %s143, 1
      %p147 = scmp.eq.s32.totalorder %s50, 3
      %p148 = scmp.ne.s32.totalorder %s143, %s145
      %p149 = scmp.eq.s32.totalorder %s50, 0
      %p150 = por %p148, %p149
      %p151 = scmp.ne.s32.totalorder %s143, %s145
      %p152 = scmp.eq.s32.totalorder %s55, 3
      %p153 = por %p151, %p152
      %p154 = scmp.ne.s32.totalorder %s145, %s146
      %p155 = scmp.eq.s32.totalorder %s55, 0
      %p156 = por %p154, %p155
      %p157 = scmp.ne.s32.totalorder %s145, %s146
      %p158 = scmp.eq.s32.totalorder %s56, 3
      %p159 = por %p157, %p158
      %p161 = scmp.ne.s32.totalorder %s146, %s160
      %p162 = scmp.eq.s32.totalorder %s56, 0
      %p163 = por %p161, %p162
      %s164 = ssub.s32 %s58, %s65
      %p165 = scmp.eq.s32.totalorder %s164, 0
      %s167 = sadd.s32 %s166, 1
      %s168 = scalar_select %p165, %s166, %s167
      %p171 = pneg %p165
      %p172 = scmp.eq.s32.totalorder %s50, 3
      %p173 = por %p171, %p172
      %p174 = scmp.ne.s32.totalorder %s166, %s169
      %p175 = scmp.eq.s32.totalorder %s50, 0
      %p176 = por %p174, %p175
      %p177 = scmp.ne.s32.totalorder %s166, %s169
      %p178 = scmp.eq.s32.totalorder %s55, 3
      %p179 = por %p177, %p178
      %p180 = scmp.ne.s32.totalorder %s169, %s170
      %p181 = scmp.eq.s32.totalorder %s55, 0
      %p182 = por %p180, %p181
      %p183 = scmp.ne.s32.totalorder %s169, %s170
      %p184 = scmp.eq.s32.totalorder %s56, 3
      %p185 = por %p183, %p184
      %p187 = scmp.ne.s32.totalorder %s170, %s186
      %p188 = scmp.eq.s32.totalorder %s56, 0
      %p189 = por %p187, %p188
      %s190 = ssub.s32 %s58, %s65
      %p191 = scmp.eq.s32.totalorder %s190, 0
      %s193 = sadd.s32 %s192, 1
      %s194 = scalar_select %p191, %s192, %s193
      %p197 = pneg %p191
      %p198 = scmp.eq.s32.totalorder %s50, 3
      %p199 = por %p197, %p198
      %p200 = scmp.ne.s32.totalorder %s192, %s195
      %p201 = scmp.eq.s32.totalorder %s50, 0
      %p202 = por %p200, %p201
      %p203 = scmp.ne.s32.totalorder %s192, %s195
      %p204 = scmp.eq.s32.totalorder %s55, 3
      %p205 = por %p203, %p204
      %p206 = scmp.ne.s32.totalorder %s195, %s196
      %p207 = scmp.eq.s32.totalorder %s55, 0
      %p208 = por %p206, %p207
      %p209 = scmp.ne.s32.totalorder %s195, %s196
      %p210 = scmp.eq.s32.totalorder %s56, 3
      %p211 = por %p209, %p210
      %p213 = scmp.ne.s32.totalorder %s196, %s212
      %p214 = scmp.eq.s32.totalorder %s56, 0
      %p215 = por %p213, %p214
      %s216 = ssub.s32 %s58, %s65
      %p217 = scmp.eq.s32.totalorder %s216, 0
      %s219 = sadd.s32 %s218, 1
      %s220 = scalar_select %p217, %s218, %s219
      %p223 = pneg %p217
      %p224 = scmp.eq.s32.totalorder %s50, 3
      %p225 = por %p223, %p224
      %p226 = scmp.ne.s32.totalorder %s218, %s221
      %p227 = scmp.eq.s32.totalorder %s50, 0
      %p228 = por %p226, %p227
      %p229 = scmp.ne.s32.totalorder %s218, %s221
      %p230 = scmp.eq.s32.totalorder %s55, 3
      %p231 = por %p229, %p230
      %p232 = scmp.ne.s32.totalorder %s221, %s222
      %p233 = scmp.eq.s32.totalorder %s55, 0
      %p234 = por %p232, %p233
      %p235 = scmp.ne.s32.totalorder %s221, %s222
      %p236 = scmp.eq.s32.totalorder %s56, 3
      %p237 = por %p235, %p236
      %p239 = scmp.ne.s32.totalorder %s222, %s238
      %p240 = scmp.eq.s32.totalorder %s56, 0
      %p241 = por %p239, %p240
      %s242 = ssub.s32 %s58, %s65
      %p243 = scmp.eq.s32.totalorder %s242, 0
      %s245 = sadd.s32 %s244, 1
      %s246 = scalar_select %p243, %s244, %s245
      %p249 = pneg %p243
      %p250 = scmp.eq.s32.totalorder %s50, 3
      %p251 = por %p249, %p250
      %p252 = scmp.ne.s32.totalorder %s244, %s247
      %p253 = scmp.eq.s32.totalorder %s50, 0
      %p254 = por %p252, %p253
      %p255 = scmp.ne.s32.totalorder %s244, %s247
      %p256 = scmp.eq.s32.totalorder %s55, 3
      %p257 = por %p255, %p256
      %p258 = scmp.ne.s32.totalorder %s247, %s248
      %p259 = scmp.eq.s32.totalorder %s55, 0
      %p260 = por %p258, %p259
      %p261 = scmp.ne.s32.totalorder %s247, %s248
      %p262 = scmp.eq.s32.totalorder %s56, 3
      %p263 = por %p261, %p262
      %p265 = scmp.ne.s32.totalorder %s248, %s264
      %p266 = scmp.eq.s32.totalorder %s56, 0
      %p267 = por %p265, %p266
      %s268 = ssub.s32 %s58, %s65
      %p269 = scmp.eq.s32.totalorder %s268, 0
      %s271 = sadd.s32 %s270, 1
      %s272 = scalar_select %p269, %s270, %s271
      %p275 = pneg %p269
      %p276 = scmp.eq.s32.totalorder %s50, 3
      %p277 = por %p275, %p276
      %p278 = scmp.ne.s32.totalorder %s270, %s273
      %p279 = scmp.eq.s32.totalorder %s50, 0
      %p280 = por %p278, %p279
      %p281 = scmp.ne.s32.totalorder %s270, %s273
      %p282 = scmp.eq.s32.totalorder %s55, 3
      %p283 = por %p281, %p282
      %p284 = scmp.ne.s32.totalorder %s273, %s274
      %p285 = scmp.eq.s32.totalorder %s55, 0
      %p286 = por %p284, %p285
      %p287 = scmp.ne.s32.totalorder %s273, %s274
      %p288 = scmp.eq.s32.totalorder %s56, 3
      %p289 = por %p287, %p288
      %p291 = scmp.ne.s32.totalorder %s274, %s290
      %p292 = scmp.eq.s32.totalorder %s56, 0
      %p293 = por %p291, %p292
      %s294 = ssub.s32 %s58, %s65
      %p295 = scmp.eq.s32.totalorder %s294, 0
      %s297 = sadd.s32 %s296, 1
      %s298 = scalar_select %p295, %s296, %s297
      %p301 = pneg %p295
      %p302 = scmp.eq.s32.totalorder %s50, 3
      %p303 = por %p301, %p302
      %p304 = scmp.ne.s32.totalorder %s296, %s299
      %p305 = scmp.eq.s32.totalorder %s50, 0
      %p306 = por %p304, %p305
      %p307 = scmp.ne.s32.totalorder %s296, %s299
      %p308 = scmp.eq.s32.totalorder %s55, 3
      %p309 = por %p307, %p308
      %p310 = scmp.ne.s32.totalorder %s299, %s300
      %p311 = scmp.eq.s32.totalorder %s55, 0
      %p312 = por %p310, %p311
      %p313 = scmp.ne.s32.totalorder %s299, %s300
      %p314 = scmp.eq.s32.totalorder %s56, 3
      %p315 = por %p313, %p314
      %p317 = scmp.ne.s32.totalorder %s300, %s316
      %p318 = scmp.eq.s32.totalorder %s56, 0
      %p319 = por %p317, %p318
      %s320 = ssub.s32 %s58, %s65
      %p321 = scmp.eq.s32.totalorder %s320, 0
      %s323 = sadd.s32 %s322, 1
      %s324 = scalar_select %p321, %s322, %s323
      %p327 = pneg %p321
      %p328 = scmp.eq.s32.totalorder %s50, 3
      %p329 = por %p327, %p328
      %p330 = scmp.ne.s32.totalorder %s322, %s325
      %p331 = scmp.eq.s32.totalorder %s50, 0
      %p332 = por %p330, %p331
      %p333 = scmp.ne.s32.totalorder %s322, %s325
      %p334 = scmp.eq.s32.totalorder %s55, 3
      %p335 = por %p333, %p334
      %p336 = scmp.ne.s32.totalorder %s325, %s326
      %p337 = scmp.eq.s32.totalorder %s55, 0
      %p338 = por %p336, %p337
      %p339 = scmp.ne.s32.totalorder %s325, %s326
      %p340 = scmp.eq.s32.totalorder %s56, 3
      %p341 = por %p339, %p340
      %p343 = scmp.ne.s32.totalorder %s326, %s342
      %p344 = scmp.eq.s32.totalorder %s56, 0
      %p345 = por %p343, %p344
      %s346 = ssub.s32 %s58, %s65
      %p347 = scmp.eq.s32.totalorder %s346, 0
      %s349 = sadd.s32 %s348, 1
      %s350 = scalar_select %p347, %s348, %s349
      %p353 = pneg %p347
      %p354 = scmp.eq.s32.totalorder %s50, 3
      %p355 = por %p353, %p354
      %p356 = scmp.ne.s32.totalorder %s348, %s351
      %p357 = scmp.eq.s32.totalorder %s50, 0
      %p358 = por %p356, %p357
      %p359 = scmp.ne.s32.totalorder %s348, %s351
      %p360 = scmp.eq.s32.totalorder %s55, 3
      %p361 = por %p359, %p360
      %p362 = scmp.ne.s32.totalorder %s351, %s352
      %p363 = scmp.eq.s32.totalorder %s55, 0
      %p364 = por %p362, %p363
      %p365 = scmp.ne.s32.totalorder %s351, %s352
      %p366 = scmp.eq.s32.totalorder %s56, 3
      %p367 = por %p365, %p366
      %p369 = scmp.ne.s32.totalorder %s352, %s368
      %p370 = scmp.eq.s32.totalorder %s56, 0
      %p371 = por %p369, %p370
      %s372 = ssub.s32 %s58, %s65
      %p373 = scmp.eq.s32.totalorder %s372, 0
      %s375 = sadd.s32 %s374, 1
      %s376 = scalar_select %p373, %s374, %s375
      %p379 = pneg %p373
      %p380 = scmp.eq.s32.totalorder %s50, 3
      %p381 = por %p379, %p380
      %p382 = scmp.ne.s32.totalorder %s374, %s377
      %p383 = scmp.eq.s32.totalorder %s50, 0
      %p384 = por %p382, %p383
      %p385 = scmp.ne.s32.totalorder %s374, %s377
      %p386 = scmp.eq.s32.totalorder %s55, 3
      %p387 = por %p385, %p386
      %p388 = scmp.ne.s32.totalorder %s377, %s378
      %p389 = scmp.eq.s32.totalorder %s55, 0
      %p390 = por %p388, %p389
      %p391 = scmp.ne.s32.totalorder %s377, %s378
      %p392 = scmp.eq.s32.totalorder %s56, 3
      %p393 = por %p391, %p392
      %p395 = scmp.ne.s32.totalorder %s378, %s394
      %p396 = scmp.eq.s32.totalorder %s56, 0
      %p397 = por %p395, %p396
      %s398 = ssub.s32 %s58, %s65
      %p399 = scmp.eq.s32.totalorder %s398, 0
      %s401 = sadd.s32 %s400, 1
      %s402 = scalar_select %p399, %s400, %s401
      %p405 = pneg %p399
      %p406 = scmp.eq.s32.totalorder %s50, 3
      %p407 = por %p405, %p406
      %p408 = scmp.ne.s32.totalorder %s400, %s403
      %p409 = scmp.eq.s32.totalorder %s50, 0
      %p410 = por %p408, %p409
      %p411 = scmp.ne.s32.totalorder %s400, %s403
      %p412 = scmp.eq.s32.totalorder %s55, 3
      %p413 = por %p411, %p412
      %p414 = scmp.ne.s32.totalorder %s403, %s404
      %p415 = scmp.eq.s32.totalorder %s55, 0
      %p416 = por %p414, %p415
      %p417 = scmp.ne.s32.totalorder %s403, %s404
      %p418 = scmp.eq.s32.totalorder %s56, 3
      %p419 = por %p417, %p418
      %p421 = scmp.ne.s32.totalorder %s404, %s420
      %p422 = scmp.eq.s32.totalorder %s56, 0
      %p423 = por %p421, %p422
      %s424 = ssub.s32 %s58, %s65
      %p425 = scmp.eq.s32.totalorder %s424, 0
      %s427 = sadd.s32 %s426, 1
      %s428 = scalar_select %p425, %s426, %s427
      %p431 = pneg %p425
      %p432 = scmp.eq.s32.totalorder %s50, 3
      %p433 = por %p431, %p432
      %p434 = scmp.ne.s32.totalorder %s426, %s429
      %p435 = scmp.eq.s32.totalorder %s50, 0
      %p436 = por %p434, %p435
      %p437 = scmp.ne.s32.totalorder %s426, %s429
      %p438 = scmp.eq.s32.totalorder %s55, 3
      %p439 = por %p437, %p438
      %p440 = scmp.ne.s32.totalorder %s429, %s430
      %p441 = scmp.eq.s32.totalorder %s55, 0
      %p442 = por %p440, %p441
      %p443 = scmp.ne.s32.totalorder %s429, %s430
      %p444 = scmp.eq.s32.totalorder %s56, 3
      %p445 = por %p443, %p444
      %p447 = scmp.ne.s32.totalorder %s430, %s446
      %p448 = scmp.eq.s32.totalorder %s56, 0
      %p449 = por %p447, %p448
      %s450 = ssub.s32 %s58, %s65
      %p451 = scmp.eq.s32.totalorder %s450, 0
      %s453 = sadd.s32 %s452, 1
      %s454 = scalar_select %p451, %s452, %s453
      %p457 = pneg %p451
      %p458 = scmp.eq.s32.totalorder %s50, 3
      %p459 = por %p457, %p458
      %p460 = scmp.ne.s32.totalorder %s452, %s455
      %p461 = scmp.eq.s32.totalorder %s50, 0
      %p462 = por %p460, %p461
      %p463 = scmp.ne.s32.totalorder %s452, %s455
      %p464 = scmp.eq.s32.totalorder %s55, 3
      %p465 = por %p463, %p464
      %p466 = scmp.ne.s32.totalorder %s455, %s456
      %p467 = scmp.eq.s32.totalorder %s55, 0
      %p468 = por %p466, %p467
      %p469 = scmp.ne.s32.totalorder %s455, %s456
      %p470 = scmp.eq.s32.totalorder %s56, 3
      %p471 = por %p469, %p470
      %p473 = scmp.ne.s32.totalorder %s456, %s472
      %p474 = scmp.eq.s32.totalorder %s56, 0
      %p475 = por %p473, %p474
      %s477 = sadd.s32 %s476, 1
      %p480 = scmp.eq.s32.totalorder %s50, 3
      %p481 = scmp.ne.s32.totalorder %s476, %s478
      %p482 = scmp.eq.s32.totalorder %s50, 0
      %p483 = por %p481, %p482
      %p484 = scmp.ne.s32.totalorder %s476, %s478
      %p485 = scmp.eq.s32.totalorder %s55, 3
      %p486 = por %p484, %p485
      %p487 = scmp.ne.s32.totalorder %s478, %s479
      %p488 = scmp.eq.s32.totalorder %s55, 0
      %p489 = por %p487, %p488
      %p490 = scmp.ne.s32.totalorder %s478, %s479
      %p491 = scmp.eq.s32.totalorder %s56, 3
      %p492 = por %p490, %p491
      %p494 = scmp.ne.s32.totalorder %s479, %s493
      %p495 = scmp.eq.s32.totalorder %s56, 0
      %p496 = por %p494, %p495
      %s498 = sadd.s32 %s497, 1
      %p501 = scmp.eq.s32.totalorder %s50, 3
      %p502 = scmp.ne.s32.totalorder %s497, %s499
      %p503 = scmp.eq.s32.totalorder %s50, 0
      %p504 = por %p502, %p503
      %p505 = scmp.ne.s32.totalorder %s497, %s499
      %p506 = scmp.eq.s32.totalorder %s55, 3
      %p507 = por %p505, %p506
      %p508 = scmp.ne.s32.totalorder %s499, %s500
      %p509 = scmp.eq.s32.totalorder %s55, 0
      %p510 = por %p508, %p509
      %p511 = scmp.ne.s32.totalorder %s499, %s500
      %p512 = scmp.eq.s32.totalorder %s56, 3
      %p513 = por %p511, %p512
      %p515 = scmp.ne.s32.totalorder %s500, %s514
      %p516 = scmp.eq.s32.totalorder %s56, 0
      %p517 = por %p515, %p516
      %s518 = ssub.s32 %s57, %s69
      %p519 = scmp.eq.s32.totalorder %s518, 0
      %s521 = sadd.s32 %s520, 1
      %s522 = scalar_select %p519, %s520, %s521
      %p525 = pneg %p519
      %p526 = scmp.eq.s32.totalorder %s50, 3
      %p527 = por %p525, %p526
      %p528 = scmp.ne.s32.totalorder %s520, %s523
      %p529 = scmp.eq.s32.totalorder %s50, 0
      %p530 = por %p528, %p529
      %p531 = scmp.ne.s32.totalorder %s520, %s523
      %p532 = scmp.eq.s32.totalorder %s55, 3
      %p533 = por %p531, %p532
      %p534 = scmp.ne.s32.totalorder %s523, %s524
      %p535 = scmp.eq.s32.totalorder %s55, 0
      %p536 = por %p534, %p535
      %p537 = scmp.ne.s32.totalorder %s523, %s524
      %p538 = scmp.eq.s32.totalorder %s56, 3
      %p539 = por %p537, %p538
      %p541 = scmp.ne.s32.totalorder %s524, %s540
      %p542 = scmp.eq.s32.totalorder %s56, 0
      %p543 = por %p541, %p542
      %s544 = ssub.s32 %s57, %s69
      %p545 = scmp.eq.s32.totalorder %s544, 0
      %s547 = sadd.s32 %s546, 1
      %s548 = scalar_select %p545, %s546, %s547
      %p551 = pneg %p545
      %p552 = scmp.eq.s32.totalorder %s50, 3
      %p553 = por %p551, %p552
      %p554 = scmp.ne.s32.totalorder %s546, %s549
      %p555 = scmp.eq.s32.totalorder %s50, 0
      %p556 = por %p554, %p555
      %p557 = scmp.ne.s32.totalorder %s546, %s549
      %p558 = scmp.eq.s32.totalorder %s55, 3
      %p559 = por %p557, %p558
      %p560 = scmp.ne.s32.totalorder %s549, %s550
      %p561 = scmp.eq.s32.totalorder %s55, 0
      %p562 = por %p560, %p561
      %p563 = scmp.ne.s32.totalorder %s549, %s550
      %p564 = scmp.eq.s32.totalorder %s56, 3
      %p565 = por %p563, %p564
      %p567 = scmp.ne.s32.totalorder %s550, %s566
      %p568 = scmp.eq.s32.totalorder %s56, 0
      %p569 = por %p567, %p568
      %p570 = scmp.le.s32.totalorder 1, %s50
      %p571 = scmp.lt.s32.totalorder %s50, 5
      %p572 = pnand %p570, %p571
      %p573 = pneg %p572
      // Predicated region
      $region9: #{tpu_custom_call.1} parent=5 // pred_check
        _
      $region10: #{tpu_custom_call.1} parent=5 // pred_check_branch
        %575 = sbr.rel (%p572) target = $region12
      $region11: #{tpu_custom_call.1} parent=5 // pred_region
        %s576 = ssub.s32 %s50, 1
        // Predicated region
        $region13: #{tpu_custom_call.1} parent=11 // pred_check
          %p577 = pneg %p135
        $region14: #{tpu_custom_call.1} parent=11 // pred_check_branch
          %579 = sbr.rel (%p577) target = $region16
        $region15: #{tpu_custom_call.1} parent=11 // pred_region
          _
        $region16: #{tpu_custom_call.1} parent=11 // pred_fallthru
          _
        // Predicated region
        $region17: #{tpu_custom_call.1} parent=11 // pred_check
          %p580 = pneg %p156
        $region18: #{tpu_custom_call.1} parent=11 // pred_check_branch
          %582 = sbr.rel (%p580) target = $region20
        $region19: #{tpu_custom_call.1} parent=11 // pred_region
          %s584 = ssub.s32 16, 16
          %585 = vsyncadd [#allocation6], %s584
          %s587 = sshll.u32 [#allocation7], 4
          %s588 = int_to_ptr.vmem [resolvable:$true] %s587
          %590 = dma.hbm_to_vmem [thread:$0]  %s3, 16, %s588, [#allocation6]
        $region20: #{tpu_custom_call.1} parent=11 // pred_fallthru
          _
        // Predicated region
        $region21: #{tpu_custom_call.1} parent=11 // pred_check
          %p591 = pneg %p489
        $region22: #{tpu_custom_call.1} parent=11 // pred_check_branch
          %593 = sbr.rel (%p591) target = $region24
        $region23: #{tpu_custom_call.1} parent=11 // pred_region
          _
        $region24: #{tpu_custom_call.1} parent=11 // pred_fallthru
          _
        // Predicated region
        $region25: #{tpu_custom_call.1} parent=11 // pred_check
          %p594 = pneg %p510
        $region26: #{tpu_custom_call.1} parent=11 // pred_check_branch
          %596 = sbr.rel (%p594) target = $region28
        $region27: #{tpu_custom_call.1} parent=11 // pred_region
          _
        $region28: #{tpu_custom_call.1} parent=11 // pred_fallthru
          _
      $region12: #{tpu_custom_call.1} parent=5 // pred_fallthru
        _
      %p597 = scmp.lt.s32.totalorder %s50, 4
      // Predicated region
      $region29: #{tpu_custom_call.1} parent=5 // pred_check
        %p598 = pneg %p597
      $region30: #{tpu_custom_call.1} parent=5 // pred_check_branch
        %600 = sbr.rel (%p598) target = $region32
      $region31: #{tpu_custom_call.1} parent=5 // pred_region
        // Predicated region
        $region33: #{tpu_custom_call.1} parent=31 // pred_check
          %p601 = pneg %p82
        $region34: #{tpu_custom_call.1} parent=31 // pred_check_branch
          %603 = sbr.rel (%p601) target = $region36
        $region35: #{tpu_custom_call.1} parent=31 // pred_region
          %s604 = sand.u32 %s72, 1
          %s605 = scalar_lea.sflag [#allocation3], %s604
          %s606 = sand.u32 %s72, 1
          %s607 = smul.addr %s606, 8
          %s608 = scalar_lea.vmem [#allocation2], %s607
          %s610 = ssub.s32 128, 128
          %611 = vsyncadd %s605, %s610
          %s612 = smul.addr %s57, 128
          %s613 = scalar_lea.hbm %s0, %s612
          %s615 = sshll.u32 %s608, 4
          %s616 = int_to_ptr.vmem [resolvable:$true] %s615
          %618 = dma.hbm_to_vmem [thread:$0]  %s613, 128, %s616, %s605
        $region36: #{tpu_custom_call.1} parent=31 // pred_fallthru
          _
        // Predicated region
        $region37: #{tpu_custom_call.1} parent=31 // pred_check
          %p619 = pneg %p108
        $region38: #{tpu_custom_call.1} parent=31 // pred_check_branch
          %621 = sbr.rel (%p619) target = $region40
        $region39: #{tpu_custom_call.1} parent=31 // pred_region
          %s622 = sand.u32 %s50, 1
          %s623 = scalar_lea.sflag [#allocation6], %s622
          %s624 = sand.u32 %s98, 1
          %s625 = scalar_lea.vmem [#allocation5], %s624
          %s627 = ssub.s32 16, 16
          %628 = vsyncadd %s623, %s627
          %s629 = smul.addr %s57, 16
          %s630 = scalar_lea.hbm %s1, %s629
          %s632 = sshll.u32 %s625, 4
          %s633 = int_to_ptr.vmem [resolvable:$true] %s632
          %635 = dma.hbm_to_vmem [thread:$0]  %s630, 16, %s633, %s623
        $region40: #{tpu_custom_call.1} parent=31 // pred_fallthru
          _
        // Predicated region
        $region41: #{tpu_custom_call.1} parent=31 // pred_check
          %p636 = pneg %p176
        $region42: #{tpu_custom_call.1} parent=31 // pred_check_branch
          %638 = sbr.rel (%p636) target = $region44
        $region43: #{tpu_custom_call.1} parent=31 // pred_region
          %p639 = scmp.lt.s32.totalorder %s58, 1
          %s640 = scalar_select %p639, %s58, 1
          %s641 = smul.addr %s640, 12
          %s642 = smul.addr %s641, 4
          %s643 = scalar_lea.vmem %s4, %s642
        $region44: #{tpu_custom_call.1} parent=31 // pred_fallthru
          _
        // Predicated region
        $region45: #{tpu_custom_call.1} parent=31 // pred_check
          %p644 = pneg %p202
        $region46: #{tpu_custom_call.1} parent=31 // pred_check_branch
          %646 = sbr.rel (%p644) target = $region48
        $region47: #{tpu_custom_call.1} parent=31 // pred_region
          %s647 = sand.u32 %s50, 1
          %s648 = scalar_lea.sflag [#allocation9], %s647
          %s649 = sand.u32 %s192, 1
          %s650 = smul.addr %s649, 3
          %s651 = scalar_lea.vmem [#allocation8], %s650
          %s653 = ssub.s32 48, 48
          %654 = vsyncadd %s648, %s653
          %s655 = smul.addr %s58, 3
          %s656 = smul.addr %s655, 16
          %s657 = scalar_lea.hbm %s5, %s656
          %s658 = sshll.u32 %s651, 4
          %s659 = int_to_ptr.vmem [resolvable:$true] %s658
          %664 = dma.hbm_to_vmem [thread:$0]  %s657, 48, %s659, %s648, 16, 16, 1
        $region48: #{tpu_custom_call.1} parent=31 // pred_fallthru
          _
        // Predicated region
        $region49: #{tpu_custom_call.1} parent=31 // pred_check
          %p665 = pneg %p228
        $region50: #{tpu_custom_call.1} parent=31 // pred_check_branch
          %667 = sbr.rel (%p665) target = $region52
        $region51: #{tpu_custom_call.1} parent=31 // pred_region
          %s668 = sand.u32 %s50, 1
          %s669 = scalar_lea.sflag [#allocation9], %s668
          %s670 = sand.u32 %s218, 1
          %s671 = smul.addr %s670, 16
          %s672 = scalar_lea.vmem [#allocation10], %s671
          %s674 = ssub.s32 256, 256
          %675 = vsyncadd %s669, %s674
          %s676 = smul.addr %s58, 4
          %s677 = smul.addr %s676, 64
          %s678 = scalar_lea.hbm %s6, %s677
          %s679 = sshll.u32 %s672, 4
          %s680 = int_to_ptr.vmem [resolvable:$true] %s679
          %685 = dma.hbm_to_vmem [thread:$0]  %s678, 256, %s680, %s669, 64, 64, 4
        $region52: #{tpu_custom_call.1} parent=31 // pred_fallthru
          _
        // Predicated region
        $region53: #{tpu_custom_call.1} parent=31 // pred_check
          %p686 = pneg %p254
        $region54: #{tpu_custom_call.1} parent=31 // pred_check_branch
          %688 = sbr.rel (%p686) target = $region56
        $region55: #{tpu_custom_call.1} parent=31 // pred_region
          %s689 = sand.u32 %s50, 1
          %s690 = scalar_lea.sflag [#allocation12], %s689
          %s691 = sand.u32 %s244, 1
          %s692 = scalar_lea.vmem [#allocation11], %s691
          %s694 = ssub.s32 16, 16
          %695 = vsyncadd %s690, %s694
          %s696 = smul.addr %s58, 16
          %s697 = scalar_lea.hbm %s7, %s696
          %s699 = sshll.u32 %s692, 4
          %s700 = int_to_ptr.vmem [resolvable:$true] %s699
          %702 = dma.hbm_to_vmem [thread:$0]  %s697, 16, %s700, %s690
        $region56: #{tpu_custom_call.1} parent=31 // pred_fallthru
          _
        // Predicated region
        $region57: #{tpu_custom_call.1} parent=31 // pred_check
          %p703 = pneg %p280
        $region58: #{tpu_custom_call.1} parent=31 // pred_check_branch
          %705 = sbr.rel (%p703) target = $region60
        $region59: #{tpu_custom_call.1} parent=31 // pred_region
          %s706 = sand.u32 %s50, 1
          %s707 = scalar_lea.sflag [#allocation12], %s706
          %s708 = sand.u32 %s270, 1
          %s709 = scalar_lea.vmem [#allocation13], %s708
          %s711 = ssub.s32 16, 16
          %712 = vsyncadd %s707, %s711
          %s713 = smul.addr %s58, 16
          %s714 = scalar_lea.hbm %s8, %s713
          %s716 = sshll.u32 %s709, 4
          %s717 = int_to_ptr.vmem [resolvable:$true] %s716
          %719 = dma.hbm_to_vmem [thread:$0]  %s714, 16, %s717, %s707
        $region60: #{tpu_custom_call.1} parent=31 // pred_fallthru
          _
        // Predicated region
        $region61: #{tpu_custom_call.1} parent=31 // pred_check
          %p720 = pneg %p306
        $region62: #{tpu_custom_call.1} parent=31 // pred_check_branch
          %722 = sbr.rel (%p720) target = $region64
        $region63: #{tpu_custom_call.1} parent=31 // pred_region
          %s723 = sand.u32 %s50, 1
          %s724 = scalar_lea.sflag [#allocation15], %s723
          %s725 = sand.u32 %s296, 1
          %s726 = scalar_lea.vmem [#allocation14], %s725
          %s728 = ssub.s32 16, 16
          %729 = vsyncadd %s724, %s728
          %s730 = smul.addr %s58, 16
          %s731 = scalar_lea.hbm %s9, %s730
          %s733 = sshll.u32 %s726, 4
          %s734 = int_to_ptr.vmem [resolvable:$true] %s733
          %736 = dma.hbm_to_vmem [thread:$0]  %s731, 16, %s734, %s724
        $region64: #{tpu_custom_call.1} parent=31 // pred_fallthru
          _
        // Predicated region
        $region65: #{tpu_custom_call.1} parent=31 // pred_check
          %p737 = pneg %p332
        $region66: #{tpu_custom_call.1} parent=31 // pred_check_branch
          %739 = sbr.rel (%p737) target = $region68
        $region67: #{tpu_custom_call.1} parent=31 // pred_region
          %s740 = sand.u32 %s50, 1
          %s741 = scalar_lea.sflag [#allocation15], %s740
          %s742 = sand.u32 %s322, 1
          %s743 = smul.addr %s742, 16
          %s744 = scalar_lea.vmem [#allocation16], %s743
          %s746 = ssub.s32 256, 256
          %747 = vsyncadd %s741, %s746
          %s748 = smul.addr %s58, 4
          %s749 = smul.addr %s748, 64
          %s750 = scalar_lea.hbm %s10, %s749
          %s751 = sshll.u32 %s744, 4
          %s752 = int_to_ptr.vmem [resolvable:$true] %s751
          %757 = dma.hbm_to_vmem [thread:$0]  %s750, 256, %s752, %s741, 64, 64, 4
        $region68: #{tpu_custom_call.1} parent=31 // pred_fallthru
          _
        // Predicated region
        $region69: #{tpu_custom_call.1} parent=31 // pred_check
          %p758 = pneg %p358
        $region70: #{tpu_custom_call.1} parent=31 // pred_check_branch
          %760 = sbr.rel (%p758) target = $region72
        $region71: #{tpu_custom_call.1} parent=31 // pred_region
          %s761 = sand.u32 %s50, 1
          %s762 = scalar_lea.sflag [#allocation18], %s761
          %s763 = sand.u32 %s348, 1
          %s764 = scalar_lea.vmem [#allocation17], %s763
          %s766 = ssub.s32 16, 16
          %767 = vsyncadd %s762, %s766
          %s768 = smul.addr %s58, 16
          %s769 = scalar_lea.hbm %s11, %s768
          %s771 = sshll.u32 %s764, 4
          %s772 = int_to_ptr.vmem [resolvable:$true] %s771
          %774 = dma.hbm_to_vmem [thread:$0]  %s769, 16, %s772, %s762
        $region72: #{tpu_custom_call.1} parent=31 // pred_fallthru
          _
        // Predicated region
        $region73: #{tpu_custom_call.1} parent=31 // pred_check
          %p775 = pneg %p384
        $region74: #{tpu_custom_call.1} parent=31 // pred_check_branch
          %777 = sbr.rel (%p775) target = $region76
        $region75: #{tpu_custom_call.1} parent=31 // pred_region
          %p778 = scmp.lt.s32.totalorder %s58, 1
          %s779 = scalar_select %p778, %s58, 1
          %s780 = smul.addr %s779, 8
          %s781 = smul.addr %s780, 4
          %s782 = scalar_lea.vmem %s12, %s781
        $region76: #{tpu_custom_call.1} parent=31 // pred_fallthru
          _
        // Predicated region
        $region77: #{tpu_custom_call.1} parent=31 // pred_check
          %p783 = pneg %p410
        $region78: #{tpu_custom_call.1} parent=31 // pred_check_branch
          %785 = sbr.rel (%p783) target = $region80
        $region79: #{tpu_custom_call.1} parent=31 // pred_region
          %s786 = sand.u32 %s50, 1
          %s787 = scalar_lea.sflag [#allocation18], %s786
          %s788 = sand.u32 %s400, 1
          %s789 = scalar_lea.vmem [#allocation19], %s788
          %s791 = ssub.s32 16, 16
          %792 = vsyncadd %s787, %s791
          %s793 = smul.addr %s58, 16
          %s794 = scalar_lea.hbm %s13, %s793
          %s796 = sshll.u32 %s789, 4
          %s797 = int_to_ptr.vmem [resolvable:$true] %s796
          %799 = dma.hbm_to_vmem [thread:$0]  %s794, 16, %s797, %s787
        $region80: #{tpu_custom_call.1} parent=31 // pred_fallthru
          _
        // Predicated region
        $region81: #{tpu_custom_call.1} parent=31 // pred_check
          %p800 = pneg %p436
        $region82: #{tpu_custom_call.1} parent=31 // pred_check_branch
          %802 = sbr.rel (%p800) target = $region84
        $region83: #{tpu_custom_call.1} parent=31 // pred_region
          %p803 = scmp.lt.s32.totalorder %s58, 1
          %s804 = scalar_select %p803, %s58, 1
          %s805 = scalar_lea.vmem %s14, %s804
        $region84: #{tpu_custom_call.1} parent=31 // pred_fallthru
          _
        // Predicated region
        $region85: #{tpu_custom_call.1} parent=31 // pred_check
          %p806 = pneg %p462
        $region86: #{tpu_custom_call.1} parent=31 // pred_check_branch
          %808 = sbr.rel (%p806) target = $region88
        $region87: #{tpu_custom_call.1} parent=31 // pred_region
          %p809 = scmp.lt.s32.totalorder %s58, 1
          %s810 = scalar_select %p809, %s58, 1
          %s811 = scalar_lea.vmem %s15, %s810
        $region88: #{tpu_custom_call.1} parent=31 // pred_fallthru
          _
      $region32: #{tpu_custom_call.1} parent=5 // pred_fallthru
        _
      %p812 = scmp.le.s32.totalorder 1, %s50
      %p813 = scmp.lt.s32.totalorder %s50, 5
      %p814 = pnand %p812, %p813
      %p815 = pneg %p814
      // Predicated region
      $region89: #{tpu_custom_call.1} parent=5 // pred_check
        _
      $region90: #{tpu_custom_call.1} parent=5 // pred_check_branch
        %817 = sbr.rel (%p814) target = $region92
      $region91: #{tpu_custom_call.1} parent=5 // pred_region
        %s818 = ssub.s32 %s50, 1
        %s819 = sand.u32 %s75, 1
        %s820 = scalar_lea.sflag [#allocation3], %s819
        %s821 = sand.u32 %s75, 1
        %s822 = smul.addr %s821, 8
        %s823 = scalar_lea.vmem [#allocation2], %s822
        // Predicated region
        $region93: #{tpu_custom_call.1} parent=91 // pred_check
          %p824 = pneg %p88
        $region94: #{tpu_custom_call.1} parent=91 // pred_check_branch
          %826 = sbr.rel (%p824) target = $region96
        $region95: #{tpu_custom_call.1} parent=91 // pred_region
          %827 = dma.done %s820, 128
        $region96: #{tpu_custom_call.1} parent=91 // pred_fallthru
          _
        %s828 = sand.u32 %s55, 1
        %s829 = scalar_lea.sflag [#allocation6], %s828
        %s830 = sand.u32 %s101, 1
        %s831 = scalar_lea.vmem [#allocation5], %s830
        // Predicated region
        $region97: #{tpu_custom_call.1} parent=91 // pred_check
          %p832 = pneg %p114
        $region98: #{tpu_custom_call.1} parent=91 // pred_check_branch
          %834 = sbr.rel (%p832) target = $region100
        $region99: #{tpu_custom_call.1} parent=91 // pred_region
          %835 = dma.done %s829, 16
        $region100: #{tpu_custom_call.1} parent=91 // pred_fallthru
          _
        // Predicated region
        $region101: #{tpu_custom_call.1} parent=91 // pred_check
          %p836 = pneg %p156
        $region102: #{tpu_custom_call.1} parent=91 // pred_check_branch
          %838 = sbr.rel (%p836) target = $region104
        $region103: #{tpu_custom_call.1} parent=91 // pred_region
          %839 = dma.done [#allocation6], 16
        $region104: #{tpu_custom_call.1} parent=91 // pred_fallthru
          _
        %s840 = sand.u32 %s55, 1
        %s841 = scalar_lea.sflag [#allocation9], %s840
        %s842 = sand.u32 %s195, 1
        %s843 = smul.addr %s842, 3
        %s844 = scalar_lea.vmem [#allocation8], %s843
        // Predicated region
        $region105: #{tpu_custom_call.1} parent=91 // pred_check
          %p845 = pneg %p208
        $region106: #{tpu_custom_call.1} parent=91 // pred_check_branch
          %847 = sbr.rel (%p845) target = $region108
        $region107: #{tpu_custom_call.1} parent=91 // pred_region
          %848 = dma.done %s841, 48
        $region108: #{tpu_custom_call.1} parent=91 // pred_fallthru
          _
        %s849 = sand.u32 %s55, 1
        %s850 = scalar_lea.sflag [#allocation9], %s849
        %s851 = sand.u32 %s221, 1
        %s852 = smul.addr %s851, 16
        %s853 = scalar_lea.vmem [#allocation10], %s852
        // Predicated region
        $region109: #{tpu_custom_call.1} parent=91 // pred_check
          %p854 = pneg %p234
        $region110: #{tpu_custom_call.1} parent=91 // pred_check_branch
          %856 = sbr.rel (%p854) target = $region112
        $region111: #{tpu_custom_call.1} parent=91 // pred_region
          %857 = dma.done %s850, 256
        $region112: #{tpu_custom_call.1} parent=91 // pred_fallthru
          _
        %s858 = sand.u32 %s55, 1
        %s859 = scalar_lea.sflag [#allocation12], %s858
        %s860 = sand.u32 %s247, 1
        %s861 = scalar_lea.vmem [#allocation11], %s860
        // Predicated region
        $region113: #{tpu_custom_call.1} parent=91 // pred_check
          %p862 = pneg %p260
        $region114: #{tpu_custom_call.1} parent=91 // pred_check_branch
          %864 = sbr.rel (%p862) target = $region116
        $region115: #{tpu_custom_call.1} parent=91 // pred_region
          %865 = dma.done %s859, 16
        $region116: #{tpu_custom_call.1} parent=91 // pred_fallthru
          _
        %s866 = sand.u32 %s55, 1
        %s867 = scalar_lea.sflag [#allocation12], %s866
        %s868 = sand.u32 %s273, 1
        %s869 = scalar_lea.vmem [#allocation13], %s868
        // Predicated region
        $region117: #{tpu_custom_call.1} parent=91 // pred_check
          %p870 = pneg %p286
        $region118: #{tpu_custom_call.1} parent=91 // pred_check_branch
          %872 = sbr.rel (%p870) target = $region120
        $region119: #{tpu_custom_call.1} parent=91 // pred_region
          %873 = dma.done %s867, 16
        $region120: #{tpu_custom_call.1} parent=91 // pred_fallthru
          _
        %s874 = sand.u32 %s55, 1
        %s875 = scalar_lea.sflag [#allocation15], %s874
        %s876 = sand.u32 %s299, 1
        %s877 = scalar_lea.vmem [#allocation14], %s876
        // Predicated region
        $region121: #{tpu_custom_call.1} parent=91 // pred_check
          %p878 = pneg %p312
        $region122: #{tpu_custom_call.1} parent=91 // pred_check_branch
          %880 = sbr.rel (%p878) target = $region124
        $region123: #{tpu_custom_call.1} parent=91 // pred_region
          %881 = dma.done %s875, 16
        $region124: #{tpu_custom_call.1} parent=91 // pred_fallthru
          _
        %s882 = sand.u32 %s55, 1
        %s883 = scalar_lea.sflag [#allocation15], %s882
        %s884 = sand.u32 %s325, 1
        %s885 = smul.addr %s884, 16
        %s886 = scalar_lea.vmem [#allocation16], %s885
        // Predicated region
        $region125: #{tpu_custom_call.1} parent=91 // pred_check
          %p887 = pneg %p338
        $region126: #{tpu_custom_call.1} parent=91 // pred_check_branch
          %889 = sbr.rel (%p887) target = $region128
        $region127: #{tpu_custom_call.1} parent=91 // pred_region
          %890 = dma.done %s883, 256
        $region128: #{tpu_custom_call.1} parent=91 // pred_fallthru
          _
        %s891 = sand.u32 %s55, 1
        %s892 = scalar_lea.sflag [#allocation18], %s891
        %s893 = sand.u32 %s351, 1
        %s894 = scalar_lea.vmem [#allocation17], %s893
        // Predicated region
        $region129: #{tpu_custom_call.1} parent=91 // pred_check
          %p895 = pneg %p364
        $region130: #{tpu_custom_call.1} parent=91 // pred_check_branch
          %897 = sbr.rel (%p895) target = $region132
        $region131: #{tpu_custom_call.1} parent=91 // pred_region
          %898 = dma.done %s892, 16
        $region132: #{tpu_custom_call.1} parent=91 // pred_fallthru
          _
        %s899 = sand.u32 %s55, 1
        %s900 = scalar_lea.sflag [#allocation18], %s899
        %s901 = sand.u32 %s403, 1
        %s902 = scalar_lea.vmem [#allocation19], %s901
        // Predicated region
        $region133: #{tpu_custom_call.1} parent=91 // pred_check
          %p903 = pneg %p416
        $region134: #{tpu_custom_call.1} parent=91 // pred_check_branch
          %905 = sbr.rel (%p903) target = $region136
        $region135: #{tpu_custom_call.1} parent=91 // pred_region
          %906 = dma.done %s900, 16
        $region136: #{tpu_custom_call.1} parent=91 // pred_fallthru
          _
        %s907 = sand.u32 %s75, 1
        %s908 = scalar_lea.sflag [#allocation3], %s907
        %s909 = sand.u32 %s75, 1
        %s910 = smul.addr %s909, 8
        %s911 = scalar_lea.vmem [#allocation2], %s910
        %p912 = pneg %p88
        %p913 = pneg %p85
        %s914 = sand.u32 %s55, 1
        %s915 = scalar_lea.sflag [#allocation6], %s914
        %s916 = sand.u32 %s101, 1
        %s917 = scalar_lea.vmem [#allocation5], %s916
        %p918 = pneg %p114
        %p919 = pneg %p111
        %p920 = pneg %p135
        %p921 = pneg %p132
        %p922 = pneg %p156
        %p923 = pneg %p153
        %p924 = scmp.lt.s32.totalorder %s60, 1
        %s925 = scalar_select %p924, %s60, 1
        %s926 = smul.addr %s925, 12
        %s927 = smul.addr %s926, 4
        %s928 = scalar_lea.vmem %s4, %s927
        %p929 = pneg %p182
        %p930 = pneg %p179
        %s931 = sand.u32 %s55, 1
        %s932 = scalar_lea.sflag [#allocation9], %s931
        %s933 = sand.u32 %s195, 1
        %s934 = smul.addr %s933, 3
        %s935 = scalar_lea.vmem [#allocation8], %s934
        %p936 = pneg %p208
        %p937 = pneg %p205
        %s938 = sand.u32 %s55, 1
        %s939 = scalar_lea.sflag [#allocation9], %s938
        %s940 = sand.u32 %s221, 1
        %s941 = smul.addr %s940, 16
        %s942 = scalar_lea.vmem [#allocation10], %s941
        %p943 = pneg %p234
        %p944 = pneg %p231
        %s945 = sand.u32 %s55, 1
        %s946 = scalar_lea.sflag [#allocation12], %s945
        %s947 = sand.u32 %s247, 1
        %s948 = scalar_lea.vmem [#allocation11], %s947
        %p949 = pneg %p260
        %p950 = pneg %p257
        %s951 = sand.u32 %s55, 1
        %s952 = scalar_lea.sflag [#allocation12], %s951
        %s953 = sand.u32 %s273, 1
        %s954 = scalar_lea.vmem [#allocation13], %s953
        %p955 = pneg %p286
        %p956 = pneg %p283
        %s957 = sand.u32 %s55, 1
        %s958 = scalar_lea.sflag [#allocation15], %s957
        %s959 = sand.u32 %s299, 1
        %s960 = scalar_lea.vmem [#allocation14], %s959
        %p961 = pneg %p312
        %p962 = pneg %p309
        %s963 = sand.u32 %s55, 1
        %s964 = scalar_lea.sflag [#allocation15], %s963
        %s965 = sand.u32 %s325, 1
        %s966 = smul.addr %s965, 16
        %s967 = scalar_lea.vmem [#allocation16], %s966
        %p968 = pneg %p338
        %p969 = pneg %p335
        %s970 = sand.u32 %s55, 1
        %s971 = scalar_lea.sflag [#allocation18], %s970
        %s972 = sand.u32 %s351, 1
        %s973 = scalar_lea.vmem [#allocation17], %s972
        %p974 = pneg %p364
        %p975 = pneg %p361
        %p976 = scmp.lt.s32.totalorder %s60, 1
        %s977 = scalar_select %p976, %s60, 1
        %s978 = smul.addr %s977, 8
        %s979 = smul.addr %s978, 4
        %s980 = scalar_lea.vmem %s12, %s979
        %p981 = pneg %p390
        %p982 = pneg %p387
        %s983 = sand.u32 %s55, 1
        %s984 = scalar_lea.sflag [#allocation18], %s983
        %s985 = sand.u32 %s403, 1
        %s986 = scalar_lea.vmem [#allocation19], %s985
        %p987 = pneg %p416
        %p988 = pneg %p413
        %p989 = scmp.lt.s32.totalorder %s60, 1
        %s990 = scalar_select %p989, %s60, 1
        %s991 = scalar_lea.vmem %s14, %s990
        %p992 = pneg %p442
        %p993 = pneg %p439
        %p994 = scmp.lt.s32.totalorder %s60, 1
        %s995 = scalar_select %p994, %s60, 1
        %s996 = scalar_lea.vmem %s15, %s995
        %p997 = pneg %p468
        %p998 = pneg %p465
        %p999 = pneg %p489
        %p1000 = pneg %p486
        %p1001 = pneg %p510
        %p1002 = pneg %p507
        %p1003 = pneg %p536
        %p1004 = pneg %p533
        %s1005 = sand.u32 %s523, 1
        %s1006 = scalar_lea.sflag [#allocation4], %s1005
        %s1007 = sand.u32 %s523, 1
        %s1008 = smul.addr %s1007, 8
        %s1009 = scalar_lea.vmem [#allocation20], %s1008
        %p1010 = pneg %p562
        %p1011 = pneg %p559
        %s1012 = sand.u32 %s549, 1
        %s1013 = scalar_lea.sflag [#allocation22], %s1012
        %s1014 = sand.u32 %s549, 1
        %s1015 = scalar_lea.vmem [#allocation21], %s1014
        %p1016 = scmp.lt.s32.totalorder %s60, 1
        %s1017 = scalar_select %p1016, %s60, 1
        %s1018 = smul.addr %s1017, 12
        %s1019 = smul.addr %s1018, 4
        %s1020 = scalar_lea.vmem %s4, %s1019
        %p1021 = scmp.lt.s32.totalorder %s60, 1
        %s1022 = scalar_select %p1021, %s60, 1
        %s1023 = smul.addr %s1022, 8
        %s1024 = smul.addr %s1023, 4
        %s1025 = scalar_lea.vmem %s12, %s1024
        %p1026 = scmp.lt.s32.totalorder %s60, 1
        %s1027 = scalar_select %p1026, %s60, 1
        %s1028 = scalar_lea.vmem %s14, %s1027
        %p1029 = scmp.lt.s32.totalorder %s60, 1
        %s1030 = scalar_select %p1029, %s60, 1
        %s1031 = scalar_lea.vmem %s15, %s1030
        %p1033 = scmp.eq.s32.totalorder %s60, 0
        // Predicated region
        $region137: #{tpu_custom_call.1} parent=91 // pred_check
          %p1034 = pneg %p1033
        $region138: #{tpu_custom_call.1} parent=91 // pred_check_branch
          %1036 = sbr.rel (%p1034) target = $region140
        $region139: #{tpu_custom_call.1} parent=91 // pred_region
          %v1037 = vld [vmem:[%s823] sm:$0xff]
          %v1038 = vld [vmem:[%s2] sm:$0x1]
          %v1039 = vld [vmem:[#allocation7] sm:$0x1]
          %vm1040 = vcmask 261120
          %v1041 = vsel %vm1040, %v1037, 0.0
          %1042 = vadd.xlane.f32.xlu0 %v1041
          %v1043 = vpop.xlane.xlu0 %1042
          %v1044 = vrcp.pop 32.0
          %v1045 = vmul.f32 %v1043, %v1044
          %v1046 = vsub.f32 %v1037, %v1045
          %v1047 = vmul.f32 %v1046, %v1046
          %v1048 = vsel %vm1040, %v1047, 0.0
          %1049 = vadd.xlane.f32.xlu0 %v1048
          %v1050 = vpop.xlane.xlu0 %1049
          %v1051 = vmul.f32 %v1050, %v1044
          %v1052 = vadd.f32 %v1051, 1e-12
          %v1053 = vrsqrt.pop %v1052
          %v1054 = vmul.f32 %v1046, %v1053
          %v1056 = vlaneseq
          %v1057 = vshrl.u32 %v1056, 7
          %v1058 = vsub.s32 0, %v1057
          %v1059 = vrot.slane %v1038, %v1058
          %v1061 = vmul.f32 %v1054, %v1059
          %v1063 = vlaneseq
          %v1064 = vshrl.u32 %v1063, 7
          %v1065 = vsub.s32 0, %v1064
          %v1066 = vrot.slane %v1039, %v1065
          %v1068 = vadd.f32 %v1061, %v1066
          %1069 = vst.msk [vmem:[%s1009] sm:$0xff] %vm1040, %v1068
        $region140: #{tpu_custom_call.1} parent=91 // pred_fallthru
          _
        %v1070 = vld [vmem:[%s1009] sm:$0xff]
        %v1071 = vld [vmem:[%s831] sm:$0x1]
        %v1072 = vpack.c.bf16 %v1070, %v1070
        %v1073 = vld [vmem:[%s1020] sm:$0xf]
        %v1074 = vld [vmem:[%s1020 + $0x4] sm:$0xf]
        %v1075 = vld [vmem:[%s1020 + $0x8] sm:$0xf]
        %v1076 = vld [vmem:[%s1020 + $0xc] sm:$0xf]
        %v1077 = vld [vmem:[%s844] sm:$0x1]
        %v1079 = vlaneseq
        %v1080 = vshrl.u32 %v1079, 7
        %v1081 = vsub.s32 0, %v1080
        %v1082 = vrot.slane %v1077, %v1081
        %v1088 = vunpack.c.l.b16 %v1073
        %v1089 = vunpack.c.l.b16 %v1074
        %v1090 = vunpack.c.l.b16 %v1075
        %v1091 = vunpack.c.l.b16 %v1076
        %v1092 = vpack.c.b16 %v1089, %v1088
        %v1093 = vpack.c.b16 %v1091, %v1090
        %vm1096 = vcmask 261120
        %v1098 = vsel %vm1096, %v1072, 0
        %1100 = vmatprep.subr.bf16.mxu0 0
        %1101 = vmatpush1.bf16.msra.mxu0 %v1092
        %1102 = vmatprep.subr.bf16.mxu0 0
        %1103 = vmatpush1.bf16.msra.mxu0 %v1093
        %1104 = vmatprep.subr.bf16.mxu0 0
        %1105 = vmatpush1.bf16.msra.mxu0 0
        %1106 = vmatprep.subr.bf16.mxu0 0
        %1107 = vmatpush1.bf16.msra.mxu0 0
        %1108 = vmatprep.subr.bf16.mxu0 0
        %1109 = vmatpush1.bf16.msra.mxu0 0
        %1110 = vmatprep.subr.bf16.mxu0 0
        %1111 = vmatpush1.bf16.msra.mxu0 0
        %1112 = vmatprep.subr.bf16.mxu0 0
        %1113 = vmatpush1.bf16.msra.mxu0 0
        %1114 = vmatprep.subr.bf16.mxu0 0
        %1115 = vmatpush1.bf16.msra.mxu0 0
        %1116 = vmatprep.subr.bf16.mxu0 0
        %1117 = vmatpush1.bf16.msra.mxu0 0
        %1118 = vmatprep.subr.bf16.mxu0 0
        %1119 = vmatpush1.bf16.msra.mxu0 0
        %1120 = vmatprep.subr.bf16.mxu0 0
        %1121 = vmatpush1.bf16.msra.mxu0 0
        %1122 = vmatprep.subr.bf16.mxu0 0
        %1123 = vmatpush1.bf16.msra.mxu0 0
        %1124 = vmatprep.subr.bf16.mxu0 0
        %1125 = vmatpush1.bf16.msra.mxu0 0
        %1126 = vmatprep.subr.bf16.mxu0 0
        %1127 = vmatpush1.bf16.msra.mxu0 0
        %1128 = vmatprep.subr.bf16.mxu0 0
        %1129 = vmatpush1.bf16.msra.mxu0 0
        %1130 = vmatprep.subr.bf16.mxu0 0
        %1131 = vmatpush1.bf16.msra.mxu0 0
        %1132 = vmatprep.mubr.bf16.mxu0 0
        %1133 = vmatmul.mubr.bf16.gmra.mrb[0].mxu0 %v1098
        %v1134 = vpop.f32.mrb[0].mxu0
        %v1135 = vadd.f32 %v1082, %v1134
        %v1136 = vpop.f32.mrb[0].mxu0
        %v1137 = vpop.f32.mrb[0].mxu0
        %v1138 = vpop.f32.mrb[0].mxu0
        %1139 = vdwg.mxu0
        %s1140 = scalar_lea.vmem %s1020, 16
        %v1141 = vld [vmem:[%s1140] sm:$0xf]
        %v1142 = vld [vmem:[%s1140 + $0x4] sm:$0xf]
        %v1143 = vld [vmem:[%s1140 + $0x8] sm:$0xf]
        %v1144 = vld [vmem:[%s1140 + $0xc] sm:$0xf]
        %s1145 = scalar_lea.vmem %s844, 1 [#allocation8]
        %v1146 = vld [vmem:[%s1145] sm:$0x1]
        %v1148 = vlaneseq
        %v1149 = vshrl.u32 %v1148, 7
        %v1150 = vsub.s32 0, %v1149
        %v1151 = vrot.slane %v1146, %v1150
        %v1157 = vunpack.c.l.b16 %v1141
        %v1158 = vunpack.c.l.b16 %v1142
        %v1159 = vunpack.c.l.b16 %v1143
        %v1160 = vunpack.c.l.b16 %v1144
        %v1161 = vpack.c.b16 %v1158, %v1157
        %v1162 = vpack.c.b16 %v1160, %v1159
        %1165 = vmatprep.subr.bf16.mxu0 0
        %1166 = vmatpush1.bf16.msra.mxu0 %v1161
        %1167 = vmatprep.subr.bf16.mxu0 0
        %1168 = vmatpush1.bf16.msra.mxu0 %v1162
        %1169 = vmatprep.subr.bf16.mxu0 0
        %1170 = vmatpush1.bf16.msra.mxu0 0
        %1171 = vmatprep.subr.bf16.mxu0 0
        %1172 = vmatpush1.bf16.msra.mxu0 0
        %1173 = vmatprep.subr.bf16.mxu0 0
        %1174 = vmatpush1.bf16.msra.mxu0 0
        %1175 = vmatprep.subr.bf16.mxu0 0
        %1176 = vmatpush1.bf16.msra.mxu0 0
        %1177 = vmatprep.subr.bf16.mxu0 0
        %1178 = vmatpush1.bf16.msra.mxu0 0
        %1179 = vmatprep.subr.bf16.mxu0 0
        %1180 = vmatpush1.bf16.msra.mxu0 0
        %1181 = vmatprep.subr.bf16.mxu0 0
        %1182 = vmatpush1.bf16.msra.mxu0 0
        %1183 = vmatprep.subr.bf16.mxu0 0
        %1184 = vmatpush1.bf16.msra.mxu0 0
        %1185 = vmatprep.subr.bf16.mxu0 0
        %1186 = vmatpush1.bf16.msra.mxu0 0
        %1187 = vmatprep.subr.bf16.mxu0 0
        %1188 = vmatpush1.bf16.msra.mxu0 0
        %1189 = vmatprep.subr.bf16.mxu0 0
        %1190 = vmatpush1.bf16.msra.mxu0 0
        %1191 = vmatprep.subr.bf16.mxu0 0
        %1192 = vmatpush1.bf16.msra.mxu0 0
        %1193 = vmatprep.subr.bf16.mxu0 0
        %1194 = vmatpush1.bf16.msra.mxu0 0
        %1195 = vmatprep.subr.bf16.mxu0 0
        %1196 = vmatpush1.bf16.msra.mxu0 0
        %1197 = vmatprep.mubr.bf16.mxu0 0
        %1198 = vmatmul.mubr.bf16.gmra.mrb[0].mxu0 %v1098
        %v1199 = vpop.f32.mrb[0].mxu0
        %v1200 = vadd.f32 %v1151, %v1199
        %v1201 = vpop.f32.mrb[0].mxu0
        %v1202 = vpop.f32.mrb[0].mxu0
        %v1203 = vpop.f32.mrb[0].mxu0
        %1204 = vdwg.mxu0
        %s1205 = scalar_lea.vmem %s1020, 32
        %v1206 = vld [vmem:[%s1205] sm:$0xf]
        %v1207 = vld [vmem:[%s1205 + $0x4] sm:$0xf]
        %v1208 = vld [vmem:[%s1205 + $0x8] sm:$0xf]
        %v1209 = vld [vmem:[%s1205 + $0xc] sm:$0xf]
        %s1210 = scalar_lea.vmem %s844, 2 [#allocation8]
        %v1211 = vld [vmem:[%s1210] sm:$0x1]
        %v1213 = vlaneseq
        %v1214 = vshrl.u32 %v1213, 7
        %v1215 = vsub.s32 0, %v1214
        %v1216 = vrot.slane %v1211, %v1215
        %v1222 = vunpack.c.l.b16 %v1206
        %v1223 = vunpack.c.l.b16 %v1207
        %v1224 = vunpack.c.l.b16 %v1208
        %v1225 = vunpack.c.l.b16 %v1209
        %v1226 = vpack.c.b16 %v1223, %v1222
        %v1227 = vpack.c.b16 %v1225, %v1224
        %1230 = vmatprep.subr.bf16.mxu0 0
        %1231 = vmatpush1.bf16.msra.mxu0 %v1226
        %1232 = vmatprep.subr.bf16.mxu0 0
        %1233 = vmatpush1.bf16.msra.mxu0 %v1227
        %1234 = vmatprep.subr.bf16.mxu0 0
        %1235 = vmatpush1.bf16.msra.mxu0 0
        %1236 = vmatprep.subr.bf16.mxu0 0
        %1237 = vmatpush1.bf16.msra.mxu0 0
        %1238 = vmatprep.subr.bf16.mxu0 0
        %1239 = vmatpush1.bf16.msra.mxu0 0
        %1240 = vmatprep.subr.bf16.mxu0 0
        %1241 = vmatpush1.bf16.msra.mxu0 0
        %1242 = vmatprep.subr.bf16.mxu0 0
        %1243 = vmatpush1.bf16.msra.mxu0 0
        %1244 = vmatprep.subr.bf16.mxu0 0
        %1245 = vmatpush1.bf16.msra.mxu0 0
        %1246 = vmatprep.subr.bf16.mxu0 0
        %1247 = vmatpush1.bf16.msra.mxu0 0
        %1248 = vmatprep.subr.bf16.mxu0 0
        %1249 = vmatpush1.bf16.msra.mxu0 0
        %1250 = vmatprep.subr.bf16.mxu0 0
        %1251 = vmatpush1.bf16.msra.mxu0 0
        %1252 = vmatprep.subr.bf16.mxu0 0
        %1253 = vmatpush1.bf16.msra.mxu0 0
        %1254 = vmatprep.subr.bf16.mxu0 0
        %1255 = vmatpush1.bf16.msra.mxu0 0
        %1256 = vmatprep.subr.bf16.mxu0 0
        %1257 = vmatpush1.bf16.msra.mxu0 0
        %1258 = vmatprep.subr.bf16.mxu0 0
        %1259 = vmatpush1.bf16.msra.mxu0 0
        %1260 = vmatprep.subr.bf16.mxu0 0
        %1261 = vmatpush1.bf16.msra.mxu0 0
        %1262 = vmatprep.mubr.bf16.mxu0 0
        %1263 = vmatmul.mubr.bf16.gmra.mrb[0].mxu0 %v1098
        %v1264 = vpop.f32.mrb[0].mxu0
        %v1265 = vadd.f32 %v1216, %v1264
        %v1266 = vpop.f32.mrb[0].mxu0
        %v1267 = vpop.f32.mrb[0].mxu0
        %v1268 = vpop.f32.mrb[0].mxu0
        %1269 = vdwg.mxu0
        %v1270 = vmul.f32 %v1135, 0.35355338
        %v1271 = vpack.c.bf16 %v1265, %v1265
        %v1272 = vpack.c.bf16 %v1270, %v1270
        %1273 = vxpose.xlu0.b32.start [1/16] %v1200, 128
        %1274 = vxpose.xlu0.b32.cont [2/16] 0.0, 128
        %1275 = vxpose.xlu0.b32.cont [3/16] 0.0, 128
        %1276 = vxpose.xlu0.b32.cont [4/16] 0.0, 128
        %1277 = vxpose.xlu0.b32.cont [5/16] 0.0, 128
        %1278 = vxpose.xlu0.b32.cont [6/16] 0.0, 128
        %1279 = vxpose.xlu0.b32.cont [7/16] 0.0, 128
        %1280 = vxpose.xlu0.b32.cont [8/16] 0.0, 128
        %1281 = vxpose.xlu0.b32.cont [9/16] 0.0, 128
        %1282 = vxpose.xlu0.b32.cont [10/16] 0.0, 128
        %1283 = vxpose.xlu0.b32.cont [11/16] 0.0, 128
        %1284 = vxpose.xlu0.b32.cont [12/16] 0.0, 128
        %1285 = vxpose.xlu0.b32.cont [13/16] 0.0, 128
        %1286 = vxpose.xlu0.b32.cont [14/16] 0.0, 128
        %1287 = vxpose.xlu0.b32.cont [15/16] 0.0, 128
        %1288 = vxpose.xlu0.b32.end [16/16] 0.0, 128
        %v1289 = vpop.trf.xlu0
        %v1290 = vpop.trf.xlu0
        %v1291 = vpop.trf.xlu0
        %v1292 = vpop.trf.xlu0
        %v1293 = vpop.trf.xlu0
        %v1294 = vpop.trf.xlu0
        %v1295 = vpop.trf.xlu0
        %v1296 = vpop.trf.xlu0
        %v1297 = vpop.trf.xlu0
        %v1298 = vpop.trf.xlu0
        %v1299 = vpop.trf.xlu0
        %v1300 = vpop.trf.xlu0
        %v1301 = vpop.trf.xlu0
        %v1302 = vpop.trf.xlu0
        %v1303 = vpop.trf.xlu0
        %v1304 = vpop.trf.xlu0
        %v1305 = vpack.c.bf16 %v1289, %v1289
        %v1307 = vlaneseq
        %v1308 = vshrl.u32 %v1307, 7
        %v1309 = vsub.s32 0, %v1308
        %v1310 = vrot.slane %v1071, %v1309
        %vm1312 = vcmask 64512
        %v1314 = vsel %vm1312, %v1272, 0
        %vm1316 = vcmask 1043456
        %v1318 = vsel %vm1316, %v1305, 0
        %1320 = vmatprep.subr.bf16.mxu0 0
        %1321 = vmatpush1.bf16.msra.mxu0 %v1318
        %1322 = vmatprep.subr.bf16.mxu0 0
        %1323 = vmatpush1.bf16.msra.mxu0 0
        %1324 = vmatprep.subr.bf16.mxu0 0
        %1325 = vmatpush1.bf16.msra.mxu0 0
        %1326 = vmatprep.subr.bf16.mxu0 0
        %1327 = vmatpush1.bf16.msra.mxu0 0
        %1328 = vmatprep.subr.bf16.mxu0 0
        %1329 = vmatpush1.bf16.msra.mxu0 0
        %1330 = vmatprep.subr.bf16.mxu0 0
        %1331 = vmatpush1.bf16.msra.mxu0 0
        %1332 = vmatprep.subr.bf16.mxu0 0
        %1333 = vmatpush1.bf16.msra.mxu0 0
        %1334 = vmatprep.subr.bf16.mxu0 0
        %1335 = vmatpush1.bf16.msra.mxu0 0
        %1336 = vmatprep.subr.bf16.mxu0 0
        %1337 = vmatpush1.bf16.msra.mxu0 0
        %1338 = vmatprep.subr.bf16.mxu0 0
        %1339 = vmatpush1.bf16.msra.mxu0 0
        %1340 = vmatprep.subr.bf16.mxu0 0
        %1341 = vmatpush1.bf16.msra.mxu0 0
        %1342 = vmatprep.subr.bf16.mxu0 0
        %1343 = vmatpush1.bf16.msra.mxu0 0
        %1344 = vmatprep.subr.bf16.mxu0 0
        %1345 = vmatpush1.bf16.msra.mxu0 0
        %1346 = vmatprep.subr.bf16.mxu0 0
        %1347 = vmatpush1.bf16.msra.mxu0 0
        %1348 = vmatprep.subr.bf16.mxu0 0
        %1349 = vmatpush1.bf16.msra.mxu0 0
        %1350 = vmatprep.subr.bf16.mxu0 0
        %1351 = vmatpush1.bf16.msra.mxu0 0
        %1352 = vmatprep.mubr.bf16.mxu0 0
        %1353 = vmatmul.mubr.bf16.gmra.mrb[0].mxu0 %v1314
        %v1354 = vpop.f32.mrb[0].mxu0
        %v1355 = vadd.f32 %v1310, %v1354
        %v1356 = vpop.f32.mrb[0].mxu0
        %v1357 = vpop.f32.mrb[0].mxu0
        %v1358 = vpop.f32.mrb[0].mxu0
        %1359 = vdwg.mxu0
        %v1360 = vsel %vm1312, %v1355, -inf
        %1361 = vmax.xlane.f32.xlu0 %v1360
        %v1362 = vpop.xlane.xlu0 %1361
        %v1363 = vsub.f32 %v1355, %v1362
        %v1364 = vmul.f32 %v1363, 1.442695
        %v1365 = vpow.pop %v1364
        %v1366 = vsel %vm1312, %v1365, 0.0
        %1367 = vadd.xlane.f32.xlu0 %v1366
        %v1368 = vpop.xlane.xlu0 %1367
        %v1369 = vrcp.pop %v1368
        %v1370 = vmul.f32 %v1365, %v1369
        %v1371 = vpack.c.bf16 %v1370, %v1370
        %v1373 = vsel %vm1312, %v1371, 0
        %v1376 = vsel %vm1316, %v1271, 0
        %1378 = vmatprep.subr.bf16.mxu0 0
        %1379 = vmatpush1.bf16.msra.mxu0 %v1376
        %1380 = vmatprep.subr.bf16.mxu0 0
        %1381 = vmatpush1.bf16.msra.mxu0 0
        %1382 = vmatprep.subr.bf16.mxu0 0
        %1383 = vmatpush1.bf16.msra.mxu0 0
        %1384 = vmatprep.subr.bf16.mxu0 0
        %1385 = vmatpush1.bf16.msra.mxu0 0
        %1386 = vmatprep.subr.bf16.mxu0 0
        %1387 = vmatpush1.bf16.msra.mxu0 0
        %1388 = vmatprep.subr.bf16.mxu0 0
        %1389 = vmatpush1.bf16.msra.mxu0 0
        %1390 = vmatprep.subr.bf16.mxu0 0
        %1391 = vmatpush1.bf16.msra.mxu0 0
        %1392 = vmatprep.subr.bf16.mxu0 0
        %1393 = vmatpush1.bf16.msra.mxu0 0
        %1394 = vmatprep.subr.bf16.mxu0 0
        %1395 = vmatpush1.bf16.msra.mxu0 0
        %1396 = vmatprep.subr.bf16.mxu0 0
        %1397 = vmatpush1.bf16.msra.mxu0 0
        %1398 = vmatprep.subr.bf16.mxu0 0
        %1399 = vmatpush1.bf16.msra.mxu0 0
        %1400 = vmatprep.subr.bf16.mxu0 0
        %1401 = vmatpush1.bf16.msra.mxu0 0
        %1402 = vmatprep.subr.bf16.mxu0 0
        %1403 = vmatpush1.bf16.msra.mxu0 0
        %1404 = vmatprep.subr.bf16.mxu0 0
        %1405 = vmatpush1.bf16.msra.mxu0 0
        %1406 = vmatprep.subr.bf16.mxu0 0
        %1407 = vmatpush1.bf16.msra.mxu0 0
        %1408 = vmatprep.subr.bf16.mxu0 0
        %1409 = vmatpush1.bf16.msra.mxu0 0
        %1410 = vmatprep.mubr.bf16.mxu0 0
        %1411 = vmatmul.mubr.bf16.gmra.mrb[0].mxu0 %v1373
        %v1412 = vpop.f32.mrb[0].mxu0
        %v1413 = vadd.f32 0.0, %v1412
        %v1414 = vpop.f32.mrb[0].mxu0
        %v1415 = vpop.f32.mrb[0].mxu0
        %v1416 = vpop.f32.mrb[0].mxu0
        %1417 = vdwg.mxu0
        %1419 = vrot.lane.b32.xlu0 %v1200, 120
        %v1420 = vpop.permute.xlu0 %1419
        %1422 = vxpose.xlu0.b32.start [1/16] %v1420, 128
        %1423 = vxpose.xlu0.b32.cont [2/16] 0.0, 128
        %1424 = vxpose.xlu0.b32.cont [3/16] 0.0, 128
        %1425 = vxpose.xlu0.b32.cont [4/16] 0.0, 128
        %1426 = vxpose.xlu0.b32.cont [5/16] 0.0, 128
        %1427 = vxpose.xlu0.b32.cont [6/16] 0.0, 128
        %1428 = vxpose.xlu0.b32.cont [7/16] 0.0, 128
        %1429 = vxpose.xlu0.b32.cont [8/16] 0.0, 128
        %1430 = vxpose.xlu0.b32.cont [9/16] 0.0, 128
        %1431 = vxpose.xlu0.b32.cont [10/16] 0.0, 128
        %1432 = vxpose.xlu0.b32.cont [11/16] 0.0, 128
        %1433 = vxpose.xlu0.b32.cont [12/16] 0.0, 128
        %1434 = vxpose.xlu0.b32.cont [13/16] 0.0, 128
        %1435 = vxpose.xlu0.b32.cont [14/16] 0.0, 128
        %1436 = vxpose.xlu0.b32.cont [15/16] 0.0, 128
        %1437 = vxpose.xlu0.b32.end [16/16] 0.0, 128
        %v1438 = vpop.trf.xlu0
        %v1439 = vpop.trf.xlu0
        %v1440 = vpop.trf.xlu0
        %v1441 = vpop.trf.xlu0
        %v1442 = vpop.trf.xlu0
        %v1443 = vpop.trf.xlu0
        %v1444 = vpop.trf.xlu0
        %v1445 = vpop.trf.xlu0
        %v1446 = vpop.trf.xlu0
        %v1447 = vpop.trf.xlu0
        %v1448 = vpop.trf.xlu0
        %v1449 = vpop.trf.xlu0
        %v1450 = vpop.trf.xlu0
        %v1451 = vpop.trf.xlu0
        %v1452 = vpop.trf.xlu0
        %v1453 = vpop.trf.xlu0
        %v1454 = vpack.c.bf16 %v1438, %v1438
        %1456 = vrot.lane.b32.xlu0 %v1272, 120
        %v1457 = vpop.permute.xlu0 %1456
        %v1459 = vsel %vm1312, %v1457, 0
        %v1462 = vsel %vm1316, %v1454, 0
        %1464 = vmatprep.subr.bf16.mxu0 0
        %1465 = vmatpush1.bf16.msra.mxu0 %v1462
        %1466 = vmatprep.subr.bf16.mxu0 0
        %1467 = vmatpush1.bf16.msra.mxu0 0
        %1468 = vmatprep.subr.bf16.mxu0 0
        %1469 = vmatpush1.bf16.msra.mxu0 0
        %1470 = vmatprep.subr.bf16.mxu0 0
        %1471 = vmatpush1.bf16.msra.mxu0 0
        %1472 = vmatprep.subr.bf16.mxu0 0
        %1473 = vmatpush1.bf16.msra.mxu0 0
        %1474 = vmatprep.subr.bf16.mxu0 0
        %1475 = vmatpush1.bf16.msra.mxu0 0
        %1476 = vmatprep.subr.bf16.mxu0 0
        %1477 = vmatpush1.bf16.msra.mxu0 0
        %1478 = vmatprep.subr.bf16.mxu0 0
        %1479 = vmatpush1.bf16.msra.mxu0 0
        %1480 = vmatprep.subr.bf16.mxu0 0
        %1481 = vmatpush1.bf16.msra.mxu0 0
        %1482 = vmatprep.subr.bf16.mxu0 0
        %1483 = vmatpush1.bf16.msra.mxu0 0
        %1484 = vmatprep.subr.bf16.mxu0 0
        %1485 = vmatpush1.bf16.msra.mxu0 0
        %1486 = vmatprep.subr.bf16.mxu0 0
        %1487 = vmatpush1.bf16.msra.mxu0 0
        %1488 = vmatprep.subr.bf16.mxu0 0
        %1489 = vmatpush1.bf16.msra.mxu0 0
        %1490 = vmatprep.subr.bf16.mxu0 0
        %1491 = vmatpush1.bf16.msra.mxu0 0
        %1492 = vmatprep.subr.bf16.mxu0 0
        %1493 = vmatpush1.bf16.msra.mxu0 0
        %1494 = vmatprep.subr.bf16.mxu0 0
        %1495 = vmatpush1.bf16.msra.mxu0 0
        %1496 = vmatprep.mubr.bf16.mxu0 0
        %1497 = vmatmul.mubr.bf16.gmra.mrb[0].mxu0 %v1459
        %v1498 = vpop.f32.mrb[0].mxu0
        %v1499 = vadd.f32 %v1310, %v1498
        %v1500 = vpop.f32.mrb[0].mxu0
        %v1501 = vpop.f32.mrb[0].mxu0
        %v1502 = vpop.f32.mrb[0].mxu0
        %1503 = vdwg.mxu0
        %v1504 = vsel %vm1312, %v1499, -inf
        %1505 = vmax.xlane.f32.xlu0 %v1504
        %v1506 = vpop.xlane.xlu0 %1505
        %v1507 = vsub.f32 %v1499, %v1506
        %v1508 = vmul.f32 %v1507, 1.442695
        %v1509 = vpow.pop %v1508
        %v1510 = vsel %vm1312, %v1509, 0.0
        %1511 = vadd.xlane.f32.xlu0 %v1510
        %v1512 = vpop.xlane.xlu0 %1511
        %v1513 = vrcp.pop %v1512
        %v1514 = vmul.f32 %v1509, %v1513
        %v1515 = vpack.c.bf16 %v1514, %v1514
        %1517 = vrot.lane.b32.xlu0 %v1271, 120
        %v1518 = vpop.permute.xlu0 %1517
        %v1520 = vsel %vm1312, %v1515, 0
        %v1523 = vsel %vm1316, %v1518, 0
        %1525 = vmatprep.subr.bf16.mxu0 0
        %1526 = vmatpush1.bf16.msra.mxu0 %v1523
        %1527 = vmatprep.subr.bf16.mxu0 0
        %1528 = vmatpush1.bf16.msra.mxu0 0
        %1529 = vmatprep.subr.bf16.mxu0 0
        %1530 = vmatpush1.bf16.msra.mxu0 0
        %1531 = vmatprep.subr.bf16.mxu0 0
        %1532 = vmatpush1.bf16.msra.mxu0 0
        %1533 = vmatprep.subr.bf16.mxu0 0
        %1534 = vmatpush1.bf16.msra.mxu0 0
        %1535 = vmatprep.subr.bf16.mxu0 0
        %1536 = vmatpush1.bf16.msra.mxu0 0
        %1537 = vmatprep.subr.bf16.mxu0 0
        %1538 = vmatpush1.bf16.msra.mxu0 0
        %1539 = vmatprep.subr.bf16.mxu0 0
        %1540 = vmatpush1.bf16.msra.mxu0 0
        %1541 = vmatprep.subr.bf16.mxu0 0
        %1542 = vmatpush1.bf16.msra.mxu0 0
        %1543 = vmatprep.subr.bf16.mxu0 0
        %1544 = vmatpush1.bf16.msra.mxu0 0
        %1545 = vmatprep.subr.bf16.mxu0 0
        %1546 = vmatpush1.bf16.msra.mxu0 0
        %1547 = vmatprep.subr.bf16.mxu0 0
        %1548 = vmatpush1.bf16.msra.mxu0 0
        %1549 = vmatprep.subr.bf16.mxu0 0
        %1550 = vmatpush1.bf16.msra.mxu0 0
        %1551 = vmatprep.subr.bf16.mxu0 0
        %1552 = vmatpush1.bf16.msra.mxu0 0
        %1553 = vmatprep.subr.bf16.mxu0 0
        %1554 = vmatpush1.bf16.msra.mxu0 0
        %1555 = vmatprep.subr.bf16.mxu0 0
        %1556 = vmatpush1.bf16.msra.mxu0 0
        %1557 = vmatprep.mubr.bf16.mxu0 0
        %1558 = vmatmul.mubr.bf16.gmra.mrb[0].mxu0 %v1520
        %v1559 = vpop.f32.mrb[0].mxu0
        %v1560 = vadd.f32 0.0, %v1559
        %v1561 = vpop.f32.mrb[0].mxu0
        %v1562 = vpop.f32.mrb[0].mxu0
        %v1563 = vpop.f32.mrb[0].mxu0
        %1564 = vdwg.mxu0
        %1565 = vrot.lane.b32.xlu0 %v1200, 112
        %v1566 = vpop.permute.xlu0 %1565
        %1568 = vxpose.xlu0.b32.start [1/16] %v1566, 128
        %1569 = vxpose.xlu0.b32.cont [2/16] 0.0, 128
        %1570 = vxpose.xlu0.b32.cont [3/16] 0.0, 128
        %1571 = vxpose.xlu0.b32.cont [4/16] 0.0, 128
        %1572 = vxpose.xlu0.b32.cont [5/16] 0.0, 128
        %1573 = vxpose.xlu0.b32.cont [6/16] 0.0, 128
        %1574 = vxpose.xlu0.b32.cont [7/16] 0.0, 128
        %1575 = vxpose.xlu0.b32.cont [8/16] 0.0, 128
        %1576 = vxpose.xlu0.b32.cont [9/16] 0.0, 128
        %1577 = vxpose.xlu0.b32.cont [10/16] 0.0, 128
        %1578 = vxpose.xlu0.b32.cont [11/16] 0.0, 128
        %1579 = vxpose.xlu0.b32.cont [12/16] 0.0, 128
        %1580 = vxpose.xlu0.b32.cont [13/16] 0.0, 128
        %1581 = vxpose.xlu0.b32.cont [14/16] 0.0, 128
        %1582 = vxpose.xlu0.b32.cont [15/16] 0.0, 128
        %1583 = vxpose.xlu0.b32.end [16/16] 0.0, 128
        %v1584 = vpop.trf.xlu0
        %v1585 = vpop.trf.xlu0
        %v1586 = vpop.trf.xlu0
        %v1587 = vpop.trf.xlu0
        %v1588 = vpop.trf.xlu0
        %v1589 = vpop.trf.xlu0
        %v1590 = vpop.trf.xlu0
        %v1591 = vpop.trf.xlu0
        %v1592 = vpop.trf.xlu0
        %v1593 = vpop.trf.xlu0
        %v1594 = vpop.trf.xlu0
        %v1595 = vpop.trf.xlu0
        %v1596 = vpop.trf.xlu0
        %v1597 = vpop.trf.xlu0
        %v1598 = vpop.trf.xlu0
        %v1599 = vpop.trf.xlu0
        %v1600 = vpack.c.bf16 %v1584, %v1584
        %1601 = vrot.lane.b32.xlu0 %v1272, 112
        %v1602 = vpop.permute.xlu0 %1601
        %v1604 = vsel %vm1312, %v1602, 0
        %v1607 = vsel %vm1316, %v1600, 0
        %1609 = vmatprep.subr.bf16.mxu0 0
        %1610 = vmatpush1.bf16.msra.mxu0 %v1607
        %1611 = vmatprep.subr.bf16.mxu0 0
        %1612 = vmatpush1.bf16.msra.mxu0 0
        %1613 = vmatprep.subr.bf16.mxu0 0
        %1614 = vmatpush1.bf16.msra.mxu0 0
        %1615 = vmatprep.subr.bf16.mxu0 0
        %1616 = vmatpush1.bf16.msra.mxu0 0
        %1617 = vmatprep.subr.bf16.mxu0 0
        %1618 = vmatpush1.bf16.msra.mxu0 0
        %1619 = vmatprep.subr.bf16.mxu0 0
        %1620 = vmatpush1.bf16.msra.mxu0 0
        %1621 = vmatprep.subr.bf16.mxu0 0
        %1622 = vmatpush1.bf16.msra.mxu0 0
        %1623 = vmatprep.subr.bf16.mxu0 0
        %1624 = vmatpush1.bf16.msra.mxu0 0
        %1625 = vmatprep.subr.bf16.mxu0 0
        %1626 = vmatpush1.bf16.msra.mxu0 0
        %1627 = vmatprep.subr.bf16.mxu0 0
        %1628 = vmatpush1.bf16.msra.mxu0 0
        %1629 = vmatprep.subr.bf16.mxu0 0
        %1630 = vmatpush1.bf16.msra.mxu0 0
        %1631 = vmatprep.subr.bf16.mxu0 0
        %1632 = vmatpush1.bf16.msra.mxu0 0
        %1633 = vmatprep.subr.bf16.mxu0 0
        %1634 = vmatpush1.bf16.msra.mxu0 0
        %1635 = vmatprep.subr.bf16.mxu0 0
        %1636 = vmatpush1.bf16.msra.mxu0 0
        %1637 = vmatprep.subr.bf16.mxu0 0
        %1638 = vmatpush1.bf16.msra.mxu0 0
        %1639 = vmatprep.subr.bf16.mxu0 0
        %1640 = vmatpush1.bf16.msra.mxu0 0
        %1641 = vmatprep.mubr.bf16.mxu0 0
        %1642 = vmatmul.mubr.bf16.gmra.mrb[0].mxu0 %v1604
        %v1643 = vpop.f32.mrb[0].mxu0
        %v1644 = vadd.f32 %v1310, %v1643
        %v1645 = vpop.f32.mrb[0].mxu0
        %v1646 = vpop.f32.mrb[0].mxu0
        %v1647 = vpop.f32.mrb[0].mxu0
        %1648 = vdwg.mxu0
        %v1649 = vsel %vm1312, %v1644, -inf
        %1650 = vmax.xlane.f32.xlu0 %v1649
        %v1651 = vpop.xlane.xlu0 %1650
        %v1652 = vsub.f32 %v1644, %v1651
        %v1653 = vmul.f32 %v1652, 1.442695
        %v1654 = vpow.pop %v1653
        %v1655 = vsel %vm1312, %v1654, 0.0
        %1656 = vadd.xlane.f32.xlu0 %v1655
        %v1657 = vpop.xlane.xlu0 %1656
        %v1658 = vrcp.pop %v1657
        %v1659 = vmul.f32 %v1654, %v1658
        %v1660 = vpack.c.bf16 %v1659, %v1659
        %1661 = vrot.lane.b32.xlu0 %v1271, 112
        %v1662 = vpop.permute.xlu0 %1661
        %v1664 = vsel %vm1312, %v1660, 0
        %v1667 = vsel %vm1316, %v1662, 0
        %1669 = vmatprep.subr.bf16.mxu0 0
        %1670 = vmatpush1.bf16.msra.mxu0 %v1667
        %1671 = vmatprep.subr.bf16.mxu0 0
        %1672 = vmatpush1.bf16.msra.mxu0 0
        %1673 = vmatprep.subr.bf16.mxu0 0
        %1674 = vmatpush1.bf16.msra.mxu0 0
        %1675 = vmatprep.subr.bf16.mxu0 0
        %1676 = vmatpush1.bf16.msra.mxu0 0
        %1677 = vmatprep.subr.bf16.mxu0 0
        %1678 = vmatpush1.bf16.msra.mxu0 0
        %1679 = vmatprep.subr.bf16.mxu0 0
        %1680 = vmatpush1.bf16.msra.mxu0 0
        %1681 = vmatprep.subr.bf16.mxu0 0
        %1682 = vmatpush1.bf16.msra.mxu0 0
        %1683 = vmatprep.subr.bf16.mxu0 0
        %1684 = vmatpush1.bf16.msra.mxu0 0
        %1685 = vmatprep.subr.bf16.mxu0 0
        %1686 = vmatpush1.bf16.msra.mxu0 0
        %1687 = vmatprep.subr.bf16.mxu0 0
        %1688 = vmatpush1.bf16.msra.mxu0 0
        %1689 = vmatprep.subr.bf16.mxu0 0
        %1690 = vmatpush1.bf16.msra.mxu0 0
        %1691 = vmatprep.subr.bf16.mxu0 0
        %1692 = vmatpush1.bf16.msra.mxu0 0
        %1693 = vmatprep.subr.bf16.mxu0 0
        %1694 = vmatpush1.bf16.msra.mxu0 0
        %1695 = vmatprep.subr.bf16.mxu0 0
        %1696 = vmatpush1.bf16.msra.mxu0 0
        %1697 = vmatprep.subr.bf16.mxu0 0
        %1698 = vmatpush1.bf16.msra.mxu0 0
        %1699 = vmatprep.subr.bf16.mxu0 0
        %1700 = vmatpush1.bf16.msra.mxu0 0
        %1701 = vmatprep.mubr.bf16.mxu0 0
        %1702 = vmatmul.mubr.bf16.gmra.mrb[0].mxu0 %v1664
        %v1703 = vpop.f32.mrb[0].mxu0
        %v1704 = vadd.f32 0.0, %v1703
        %v1705 = vpop.f32.mrb[0].mxu0
        %v1706 = vpop.f32.mrb[0].mxu0
        %v1707 = vpop.f32.mrb[0].mxu0
        %1708 = vdwg.mxu0
        %1709 = vrot.lane.b32.xlu0 %v1200, 104
        %v1710 = vpop.permute.xlu0 %1709
        %1712 = vxpose.xlu0.b32.start [1/16] %v1710, 128
        %1713 = vxpose.xlu0.b32.cont [2/16] 0.0, 128
        %1714 = vxpose.xlu0.b32.cont [3/16] 0.0, 128
        %1715 = vxpose.xlu0.b32.cont [4/16] 0.0, 128
        %1716 = vxpose.xlu0.b32.cont [5/16] 0.0, 128
        %1717 = vxpose.xlu0.b32.cont [6/16] 0.0, 128
        %1718 = vxpose.xlu0.b32.cont [7/16] 0.0, 128
        %1719 = vxpose.xlu0.b32.cont [8/16] 0.0, 128
        %1720 = vxpose.xlu0.b32.cont [9/16] 0.0, 128
        %1721 = vxpose.xlu0.b32.cont [10/16] 0.0, 128
        %1722 = vxpose.xlu0.b32.cont [11/16] 0.0, 128
        %1723 = vxpose.xlu0.b32.cont [12/16] 0.0, 128
        %1724 = vxpose.xlu0.b32.cont [13/16] 0.0, 128
        %1725 = vxpose.xlu0.b32.cont [14/16] 0.0, 128
        %1726 = vxpose.xlu0.b32.cont [15/16] 0.0, 128
        %1727 = vxpose.xlu0.b32.end [16/16] 0.0, 128
        %v1728 = vpop.trf.xlu0
        %v1729 = vpop.trf.xlu0
        %v1730 = vpop.trf.xlu0
        %v1731 = vpop.trf.xlu0
        %v1732 = vpop.trf.xlu0
        %v1733 = vpop.trf.xlu0
        %v1734 = vpop.trf.xlu0
        %v1735 = vpop.trf.xlu0
        %v1736 = vpop.trf.xlu0
        %v1737 = vpop.trf.xlu0
        %v1738 = vpop.trf.xlu0
        %v1739 = vpop.trf.xlu0
        %v1740 = vpop.trf.xlu0
        %v1741 = vpop.trf.xlu0
        %v1742 = vpop.trf.xlu0
        %v1743 = vpop.trf.xlu0
        %v1744 = vpack.c.bf16 %v1728, %v1728
        %1745 = vrot.lane.b32.xlu0 %v1272, 104
        %v1746 = vpop.permute.xlu0 %1745
        %v1748 = vsel %vm1312, %v1746, 0
        %v1751 = vsel %vm1316, %v1744, 0
        %1753 = vmatprep.subr.bf16.mxu0 0
        %1754 = vmatpush1.bf16.msra.mxu0 %v1751
        %1755 = vmatprep.subr.bf16.mxu0 0
        %1756 = vmatpush1.bf16.msra.mxu0 0
        %1757 = vmatprep.subr.bf16.mxu0 0
        %1758 = vmatpush1.bf16.msra.mxu0 0
        %1759 = vmatprep.subr.bf16.mxu0 0
        %1760 = vmatpush1.bf16.msra.mxu0 0
        %1761 = vmatprep.subr.bf16.mxu0 0
        %1762 = vmatpush1.bf16.msra.mxu0 0
        %1763 = vmatprep.subr.bf16.mxu0 0
        %1764 = vmatpush1.bf16.msra.mxu0 0
        %1765 = vmatprep.subr.bf16.mxu0 0
        %1766 = vmatpush1.bf16.msra.mxu0 0
        %1767 = vmatprep.subr.bf16.mxu0 0
        %1768 = vmatpush1.bf16.msra.mxu0 0
        %1769 = vmatprep.subr.bf16.mxu0 0
        %1770 = vmatpush1.bf16.msra.mxu0 0
        %1771 = vmatprep.subr.bf16.mxu0 0
        %1772 = vmatpush1.bf16.msra.mxu0 0
        %1773 = vmatprep.subr.bf16.mxu0 0
        %1774 = vmatpush1.bf16.msra.mxu0 0
        %1775 = vmatprep.subr.bf16.mxu0 0
        %1776 = vmatpush1.bf16.msra.mxu0 0
        %1777 = vmatprep.subr.bf16.mxu0 0
        %1778 = vmatpush1.bf16.msra.mxu0 0
        %1779 = vmatprep.subr.bf16.mxu0 0
        %1780 = vmatpush1.bf16.msra.mxu0 0
        %1781 = vmatprep.subr.bf16.mxu0 0
        %1782 = vmatpush1.bf16.msra.mxu0 0
        %1783 = vmatprep.subr.bf16.mxu0 0
        %1784 = vmatpush1.bf16.msra.mxu0 0
        %1785 = vmatprep.mubr.bf16.mxu0 0
        %1786 = vmatmul.mubr.bf16.gmra.mrb[0].mxu0 %v1748
        %v1787 = vpop.f32.mrb[0].mxu0
        %v1788 = vadd.f32 %v1310, %v1787
        %v1789 = vpop.f32.mrb[0].mxu0
        %v1790 = vpop.f32.mrb[0].mxu0
        %v1791 = vpop.f32.mrb[0].mxu0
        %1792 = vdwg.mxu0
        %v1793 = vsel %vm1312, %v1788, -inf
        %1794 = vmax.xlane.f32.xlu0 %v1793
        %v1795 = vpop.xlane.xlu0 %1794
        %v1796 = vsub.f32 %v1788, %v1795
        %v1797 = vmul.f32 %v1796, 1.442695
        %v1798 = vpow.pop %v1797
        %v1799 = vsel %vm1312, %v1798, 0.0
        %1800 = vadd.xlane.f32.xlu0 %v1799
        %v1801 = vpop.xlane.xlu0 %1800
        %v1802 = vrcp.pop %v1801
        %v1803 = vmul.f32 %v1798, %v1802
        %v1804 = vpack.c.bf16 %v1803, %v1803
        %1805 = vrot.lane.b32.xlu0 %v1271, 104
        %v1806 = vpop.permute.xlu0 %1805
        %v1808 = vsel %vm1312, %v1804, 0
        %v1811 = vsel %vm1316, %v1806, 0
        %1813 = vmatprep.subr.bf16.mxu0 0
        %1814 = vmatpush1.bf16.msra.mxu0 %v1811
        %1815 = vmatprep.subr.bf16.mxu0 0
        %1816 = vmatpush1.bf16.msra.mxu0 0
        %1817 = vmatprep.subr.bf16.mxu0 0
        %1818 = vmatpush1.bf16.msra.mxu0 0
        %1819 = vmatprep.subr.bf16.mxu0 0
        %1820 = vmatpush1.bf16.msra.mxu0 0
        %1821 = vmatprep.subr.bf16.mxu0 0
        %1822 = vmatpush1.bf16.msra.mxu0 0
        %1823 = vmatprep.subr.bf16.mxu0 0
        %1824 = vmatpush1.bf16.msra.mxu0 0
        %1825 = vmatprep.subr.bf16.mxu0 0
        %1826 = vmatpush1.bf16.msra.mxu0 0
        %1827 = vmatprep.subr.bf16.mxu0 0
        %1828 = vmatpush1.bf16.msra.mxu0 0
        %1829 = vmatprep.subr.bf16.mxu0 0
        %1830 = vmatpush1.bf16.msra.mxu0 0
        %1831 = vmatprep.subr.bf16.mxu0 0
        %1832 = vmatpush1.bf16.msra.mxu0 0
        %1833 = vmatprep.subr.bf16.mxu0 0
        %1834 = vmatpush1.bf16.msra.mxu0 0
        %1835 = vmatprep.subr.bf16.mxu0 0
        %1836 = vmatpush1.bf16.msra.mxu0 0
        %1837 = vmatprep.subr.bf16.mxu0 0
        %1838 = vmatpush1.bf16.msra.mxu0 0
        %1839 = vmatprep.subr.bf16.mxu0 0
        %1840 = vmatpush1.bf16.msra.mxu0 0
        %1841 = vmatprep.subr.bf16.mxu0 0
        %1842 = vmatpush1.bf16.msra.mxu0 0
        %1843 = vmatprep.subr.bf16.mxu0 0
        %1844 = vmatpush1.bf16.msra.mxu0 0
        %1845 = vmatprep.mubr.bf16.mxu0 0
        %1846 = vmatmul.mubr.bf16.gmra.mrb[0].mxu0 %v1808
        %v1847 = vpop.f32.mrb[0].mxu0
        %v1848 = vadd.f32 0.0, %v1847
        %v1849 = vpop.f32.mrb[0].mxu0
        %v1850 = vpop.f32.mrb[0].mxu0
        %v1851 = vpop.f32.mrb[0].mxu0
        %1852 = vdwg.mxu0
        %1854 = vrot.lane.b32.xlu0 %v1560, 8
        %v1855 = vpop.permute.xlu0 %1854
        %1858 = vrot.lane.b32.xlu0 %v1704, 16
        %v1859 = vpop.permute.xlu0 %1858
        %1862 = vrot.lane.b32.xlu0 %v1848, 24
        %v1863 = vpop.permute.xlu0 %1862
        %v1865 = vsel %vm1312, %v1413, %v1855
        %vm1866 = vcmask 130048
        %v1867 = vsel %vm1866, %v1865, %v1859
        %vm1868 = vcmask 195584
        %v1869 = vsel %vm1868, %v1867, %v1863
        %v1870 = vpack.c.bf16 %v1869, %v1869
        %v1871 = vld [vmem:[%s853] sm:$0xf]
        %v1872 = vld [vmem:[%s853 + $0x4] sm:$0xf]
        %v1873 = vld [vmem:[%s853 + $0x8] sm:$0xf]
        %v1874 = vld [vmem:[%s853 + $0xc] sm:$0xf]
        %v1875 = vld [vmem:[%s861] sm:$0x1]
        %v1877 = vlaneseq
        %v1878 = vshrl.u32 %v1877, 7
        %v1879 = vsub.s32 0, %v1878
        %v1880 = vrot.slane %v1875, %v1879
        %v1886 = vunpack.c.l.b16 %v1871
        %v1887 = vunpack.c.l.b16 %v1872
        %v1888 = vunpack.c.l.b16 %v1873
        %v1889 = vunpack.c.l.b16 %v1874
        %v1890 = vpack.c.b16 %v1887, %v1886
        %v1891 = vpack.c.b16 %v1889, %v1888
        %v1895 = vsel %vm1096, %v1870, 0
        %1897 = vmatprep.subr.bf16.mxu0 0
        %1898 = vmatpush1.bf16.msra.mxu0 %v1890
        %1899 = vmatprep.subr.bf16.mxu0 0
        %1900 = vmatpush1.bf16.msra.mxu0 %v1891
        %1901 = vmatprep.subr.bf16.mxu0 0
        %1902 = vmatpush1.bf16.msra.mxu0 0
        %1903 = vmatprep.subr.bf16.mxu0 0
        %1904 = vmatpush1.bf16.msra.mxu0 0
        %1905 = vmatprep.subr.bf16.mxu0 0
        %1906 = vmatpush1.bf16.msra.mxu0 0
        %1907 = vmatprep.subr.bf16.mxu0 0
        %1908 = vmatpush1.bf16.msra.mxu0 0
        %1909 = vmatprep.subr.bf16.mxu0 0
        %1910 = vmatpush1.bf16.msra.mxu0 0
        %1911 = vmatprep.subr.bf16.mxu0 0
        %1912 = vmatpush1.bf16.msra.mxu0 0
        %1913 = vmatprep.subr.bf16.mxu0 0
        %1914 = vmatpush1.bf16.msra.mxu0 0
        %1915 = vmatprep.subr.bf16.mxu0 0
        %1916 = vmatpush1.bf16.msra.mxu0 0
        %1917 = vmatprep.subr.bf16.mxu0 0
        %1918 = vmatpush1.bf16.msra.mxu0 0
        %1919 = vmatprep.subr.bf16.mxu0 0
        %1920 = vmatpush1.bf16.msra.mxu0 0
        %1921 = vmatprep.subr.bf16.mxu0 0
        %1922 = vmatpush1.bf16.msra.mxu0 0
        %1923 = vmatprep.subr.bf16.mxu0 0
        %1924 = vmatpush1.bf16.msra.mxu0 0
        %1925 = vmatprep.subr.bf16.mxu0 0
        %1926 = vmatpush1.bf16.msra.mxu0 0
        %1927 = vmatprep.subr.bf16.mxu0 0
        %1928 = vmatpush1.bf16.msra.mxu0 0
        %1929 = vmatprep.mubr.bf16.mxu0 0
        %1930 = vmatmul.mubr.bf16.gmra.mrb[0].mxu0 %v1895
        %v1931 = vpop.f32.mrb[0].mxu0
        %v1932 = vadd.f32 %v1880, %v1931
        %v1933 = vpop.f32.mrb[0].mxu0
        %v1934 = vpop.f32.mrb[0].mxu0
        %v1935 = vpop.f32.mrb[0].mxu0
        %1936 = vdwg.mxu0
        %v1937 = vadd.f32 %v1932, %v1070
        %v1938 = vld [vmem:[%s869] sm:$0x1]
        %v1939 = vld [vmem:[%s877] sm:$0x1]
        %v1940 = vsel %vm1096, %v1937, 0.0
        %1941 = vadd.xlane.f32.xlu0 %v1940
        %v1942 = vpop.xlane.xlu0 %1941
        %v1943 = vrcp.pop 32.0
        %v1944 = vmul.f32 %v1942, %v1943
        %v1945 = vsub.f32 %v1937, %v1944
        %v1946 = vmul.f32 %v1945, %v1945
        %v1947 = vsel %vm1096, %v1946, 0.0
        %1948 = vadd.xlane.f32.xlu0 %v1947
        %v1949 = vpop.xlane.xlu0 %1948
        %v1950 = vmul.f32 %v1949, %v1943
        %v1951 = vadd.f32 %v1950, 1e-12
        %v1952 = vrsqrt.pop %v1951
        %v1953 = vmul.f32 %v1945, %v1952
        %v1955 = vlaneseq
        %v1956 = vshrl.u32 %v1955, 7
        %v1957 = vsub.s32 0, %v1956
        %v1958 = vrot.slane %v1938, %v1957
        %v1960 = vmul.f32 %v1953, %v1958
        %v1962 = vlaneseq
        %v1963 = vshrl.u32 %v1962, 7
        %v1964 = vsub.s32 0, %v1963
        %v1965 = vrot.slane %v1939, %v1964
        %v1967 = vadd.f32 %v1960, %v1965
        %v1968 = vpack.c.bf16 %v1967, %v1967
        %v1969 = vld [vmem:[%s886] sm:$0xf]
        %v1970 = vld [vmem:[%s886 + $0x4] sm:$0xf]
        %v1971 = vld [vmem:[%s886 + $0x8] sm:$0xf]
        %v1972 = vld [vmem:[%s886 + $0xc] sm:$0xf]
        %v1973 = vld [vmem:[%s894] sm:$0x1]
        %v1975 = vlaneseq
        %v1976 = vshrl.u32 %v1975, 7
        %v1977 = vsub.s32 0, %v1976
        %v1978 = vrot.slane %v1973, %v1977
        %v1984 = vunpack.c.l.b16 %v1969
        %v1985 = vunpack.c.l.b16 %v1970
        %v1986 = vunpack.c.l.b16 %v1971
        %v1987 = vunpack.c.l.b16 %v1972
        %v1988 = vpack.c.b16 %v1985, %v1984
        %v1989 = vpack.c.b16 %v1987, %v1986
        %v1993 = vsel %vm1096, %v1968, 0
        %1995 = vmatprep.subr.bf16.mxu0 0
        %1996 = vmatpush1.bf16.msra.mxu0 %v1988
        %1997 = vmatprep.subr.bf16.mxu0 0
        %1998 = vmatpush1.bf16.msra.mxu0 %v1989
        %1999 = vmatprep.subr.bf16.mxu0 0
        %2000 = vmatpush1.bf16.msra.mxu0 0
        %2001 = vmatprep.subr.bf16.mxu0 0
        %2002 = vmatpush1.bf16.msra.mxu0 0
        %2003 = vmatprep.subr.bf16.mxu0 0
        %2004 = vmatpush1.bf16.msra.mxu0 0
        %2005 = vmatprep.subr.bf16.mxu0 0
        %2006 = vmatpush1.bf16.msra.mxu0 0
        %2007 = vmatprep.subr.bf16.mxu0 0
        %2008 = vmatpush1.bf16.msra.mxu0 0
        %2009 = vmatprep.subr.bf16.mxu0 0
        %2010 = vmatpush1.bf16.msra.mxu0 0
        %2011 = vmatprep.subr.bf16.mxu0 0
        %2012 = vmatpush1.bf16.msra.mxu0 0
        %2013 = vmatprep.subr.bf16.mxu0 0
        %2014 = vmatpush1.bf16.msra.mxu0 0
        %2015 = vmatprep.subr.bf16.mxu0 0
        %2016 = vmatpush1.bf16.msra.mxu0 0
        %2017 = vmatprep.subr.bf16.mxu0 0
        %2018 = vmatpush1.bf16.msra.mxu0 0
        %2019 = vmatprep.subr.bf16.mxu0 0
        %2020 = vmatpush1.bf16.msra.mxu0 0
        %2021 = vmatprep.subr.bf16.mxu0 0
        %2022 = vmatpush1.bf16.msra.mxu0 0
        %2023 = vmatprep.subr.bf16.mxu0 0
        %2024 = vmatpush1.bf16.msra.mxu0 0
        %2025 = vmatprep.subr.bf16.mxu0 0
        %2026 = vmatpush1.bf16.msra.mxu0 0
        %2027 = vmatprep.mubr.bf16.mxu0 0
        %2028 = vmatmul.mubr.bf16.gmra.mrb[0].mxu0 %v1993
        %v2029 = vpop.f32.mrb[0].mxu0
        %v2030 = vadd.f32 %v1978, %v2029
        %v2031 = vpop.f32.mrb[0].mxu0
        %v2032 = vpop.f32.mrb[0].mxu0
        %v2033 = vpop.f32.mrb[0].mxu0
        %2034 = vdwg.mxu0
        %v2035 = vmul.f32 %v2030, %v2030
        %v2036 = vmul.f32 %v2030, %v2035
        %v2037 = vmul.f32 %v2036, 0.044715
        %v2038 = vadd.f32 %v2030, %v2037
        %v2039 = vmul.f32 %v2038, 0.7978846
        %v2040 = vtanh.pop %v2039
        %v2041 = vadd.f32 %v2040, 1.0
        %v2042 = vmul.f32 %v2041, 0.5
        %v2043 = vmul.f32 %v2030, %v2042
        %v2044 = vpack.c.bf16 %v2043, %v2043
        %v2045 = vld [vmem:[%s1025] sm:$0xf]
        %v2046 = vld [vmem:[%s1025 + $0x4] sm:$0xf]
        %v2047 = vld [vmem:[%s1025 + $0x8] sm:$0xf]
        %v2048 = vld [vmem:[%s1025 + $0xc] sm:$0xf]
        %v2049 = vld [vmem:[%s1025 + $0x10] sm:$0xf]
        %v2050 = vld [vmem:[%s1025 + $0x14] sm:$0xf]
        %v2051 = vld [vmem:[%s1025 + $0x18] sm:$0xf]
        %v2052 = vld [vmem:[%s1025 + $0x1c] sm:$0xf]
        %v2053 = vld [vmem:[%s902] sm:$0x1]
        %v2055 = vlaneseq
        %v2056 = vshrl.u32 %v2055, 7
        %v2057 = vsub.s32 0, %v2056
        %v2058 = vrot.slane %v2053, %v2057
        %v2068 = vunpack.c.l.b16 %v2045
        %v2069 = vunpack.c.l.b16 %v2046
        %v2070 = vunpack.c.l.b16 %v2047
        %v2071 = vunpack.c.l.b16 %v2048
        %v2072 = vunpack.c.l.b16 %v2049
        %v2073 = vunpack.c.l.b16 %v2050
        %v2074 = vunpack.c.l.b16 %v2051
        %v2075 = vunpack.c.l.b16 %v2052
        %v2076 = vpack.c.b16 %v2069, %v2068
        %v2077 = vpack.c.b16 %v2071, %v2070
        %v2078 = vpack.c.b16 %v2073, %v2072
        %v2079 = vpack.c.b16 %v2075, %v2074
        %vm2084 = vcmask 523264
        %v2086 = vsel %vm2084, %v2044, 0
        %2088 = vmatprep.subr.bf16.mxu0 0
        %2089 = vmatpush1.bf16.msra.mxu0 %v2076
        %2090 = vmatprep.subr.bf16.mxu0 0
        %2091 = vmatpush1.bf16.msra.mxu0 %v2077
        %2092 = vmatprep.subr.bf16.mxu0 0
        %2093 = vmatpush1.bf16.msra.mxu0 %v2078
        %2094 = vmatprep.subr.bf16.mxu0 0
        %2095 = vmatpush1.bf16.msra.mxu0 %v2079
        %2096 = vmatprep.subr.bf16.mxu0 0
        %2097 = vmatpush1.bf16.msra.mxu0 0
        %2098 = vmatprep.subr.bf16.mxu0 0
        %2099 = vmatpush1.bf16.msra.mxu0 0
        %2100 = vmatprep.subr.bf16.mxu0 0
        %2101 = vmatpush1.bf16.msra.mxu0 0
        %2102 = vmatprep.subr.bf16.mxu0 0
        %2103 = vmatpush1.bf16.msra.mxu0 0
        %2104 = vmatprep.subr.bf16.mxu0 0
        %2105 = vmatpush1.bf16.msra.mxu0 0
        %2106 = vmatprep.subr.bf16.mxu0 0
        %2107 = vmatpush1.bf16.msra.mxu0 0
        %2108 = vmatprep.subr.bf16.mxu0 0
        %2109 = vmatpush1.bf16.msra.mxu0 0
        %2110 = vmatprep.subr.bf16.mxu0 0
        %2111 = vmatpush1.bf16.msra.mxu0 0
        %2112 = vmatprep.subr.bf16.mxu0 0
        %2113 = vmatpush1.bf16.msra.mxu0 0
        %2114 = vmatprep.subr.bf16.mxu0 0
        %2115 = vmatpush1.bf16.msra.mxu0 0
        %2116 = vmatprep.subr.bf16.mxu0 0
        %2117 = vmatpush1.bf16.msra.mxu0 0
        %2118 = vmatprep.subr.bf16.mxu0 0
        %2119 = vmatpush1.bf16.msra.mxu0 0
        %2120 = vmatprep.mubr.bf16.mxu0 0
        %2121 = vmatmul.mubr.bf16.gmra.mrb[0].mxu0 %v2086
        %v2122 = vpop.f32.mrb[0].mxu0
        %v2123 = vadd.f32 %v2058, %v2122
        %v2124 = vpop.f32.mrb[0].mxu0
        %v2125 = vpop.f32.mrb[0].mxu0
        %v2126 = vpop.f32.mrb[0].mxu0
        %2127 = vdwg.mxu0
        %v2128 = vadd.f32 %v2123, %v1967
        %v2129 = vld [vmem:[%s1028] sm:$0x1]
        %v2130 = vld [vmem:[%s1031] sm:$0x1]
        %v2131 = vsel %vm1096, %v2128, 0.0
        %2132 = vadd.xlane.f32.xlu0 %v2131
        %v2133 = vpop.xlane.xlu0 %2132
        %v2134 = vmul.f32 %v2133, %v1943
        %v2135 = vsub.f32 %v2128, %v2134
        %v2136 = vmul.f32 %v2135, %v2135
        %v2137 = vsel %vm1096, %v2136, 0.0
        %2138 = vadd.xlane.f32.xlu0 %v2137
        %v2139 = vpop.xlane.xlu0 %2138
        %v2140 = vmul.f32 %v2139, %v1943
        %v2141 = vadd.f32 %v2140, 1e-12
        %v2142 = vrsqrt.pop %v2141
        %v2143 = vmul.f32 %v2135, %v2142
        %v2145 = vlaneseq
        %v2146 = vshrl.u32 %v2145, 7
        %v2147 = vsub.s32 0, %v2146
        %v2148 = vrot.slane %v2129, %v2147
        %v2150 = vmul.f32 %v2143, %v2148
        %v2152 = vlaneseq
        %v2153 = vshrl.u32 %v2152, 7
        %v2154 = vsub.s32 0, %v2153
        %v2155 = vrot.slane %v2130, %v2154
        %v2157 = vadd.f32 %v2150, %v2155
        %2158 = vst.msk [vmem:[%s1009] sm:$0xff] %vm1096, %v2157
        %p2159 = scmp.eq.s32.totalorder %s60, 1
        // Predicated region
        $region141: #{tpu_custom_call.1} parent=91 // pred_check
          %p2160 = pneg %p2159
        $region142: #{tpu_custom_call.1} parent=91 // pred_check_branch
          %2162 = sbr.rel (%p2160) target = $region144
        $region143: #{tpu_custom_call.1} parent=91 // pred_region
          %v2163 = vpack.c.bf16 %v2157, %v2157
          %v2164 = vld [vmem:[%s16] sm:$0xf]
          %v2165 = vld [vmem:[%s16 + $0x4] sm:$0xf]
          %v2166 = vld [vmem:[%s16 + $0x8] sm:$0xf]
          %v2167 = vld [vmem:[%s16 + $0xc] sm:$0xf]
          %v2168 = vld [vmem:[%s17] sm:$0x1]
          %v2173 = vunpack.c.l.b16 %v2164
          %v2174 = vunpack.c.l.b16 %v2165
          %v2175 = vunpack.c.l.b16 %v2166
          %v2176 = vunpack.c.l.b16 %v2167
          %v2177 = vpack.c.b16 %v2174, %v2173
          %v2178 = vpack.c.b16 %v2176, %v2175
          %v2182 = vsel %vm1096, %v2163, 0
          %2184 = vmatprep.subr.bf16.mxu0 0
          %2185 = vmatpush1.bf16.msra.mxu0 %v2177
          %2186 = vmatprep.subr.bf16.mxu0 0
          %2187 = vmatpush1.bf16.msra.mxu0 %v2178
          %2188 = vmatprep.subr.bf16.mxu0 0
          %2189 = vmatpush1.bf16.msra.mxu0 0
          %2190 = vmatprep.subr.bf16.mxu0 0
          %2191 = vmatpush1.bf16.msra.mxu0 0
          %2192 = vmatprep.subr.bf16.mxu0 0
          %2193 = vmatpush1.bf16.msra.mxu0 0
          %2194 = vmatprep.subr.bf16.mxu0 0
          %2195 = vmatpush1.bf16.msra.mxu0 0
          %2196 = vmatprep.subr.bf16.mxu0 0
          %2197 = vmatpush1.bf16.msra.mxu0 0
          %2198 = vmatprep.subr.bf16.mxu0 0
          %2199 = vmatpush1.bf16.msra.mxu0 0
          %2200 = vmatprep.subr.bf16.mxu0 0
          %2201 = vmatpush1.bf16.msra.mxu0 0
          %2202 = vmatprep.subr.bf16.mxu0 0
          %2203 = vmatpush1.bf16.msra.mxu0 0
          %2204 = vmatprep.subr.bf16.mxu0 0
          %2205 = vmatpush1.bf16.msra.mxu0 0
          %2206 = vmatprep.subr.bf16.mxu0 0
          %2207 = vmatpush1.bf16.msra.mxu0 0
          %2208 = vmatprep.subr.bf16.mxu0 0
          %2209 = vmatpush1.bf16.msra.mxu0 0
          %2210 = vmatprep.subr.bf16.mxu0 0
          %2211 = vmatpush1.bf16.msra.mxu0 0
          %2212 = vmatprep.subr.bf16.mxu0 0
          %2213 = vmatpush1.bf16.msra.mxu0 0
          %2214 = vmatprep.subr.bf16.mxu0 0
          %2215 = vmatpush1.bf16.msra.mxu0 0
          %2216 = vmatprep.mubr.bf16.mxu0 0
          %2217 = vmatmul.mubr.bf16.gmra.mrb[0].mxu0 %v2182
          %v2218 = vpop.f32.mrb[0].mxu0
          %v2219 = vadd.f32 %v2168, %v2218
          %v2220 = vpop.f32.mrb[0].mxu0
          %v2221 = vpop.f32.mrb[0].mxu0
          %v2222 = vpop.f32.mrb[0].mxu0
          %2223 = vdwg.mxu0
          %v2224 = vtanh.pop %v2219
          %vm2225 = vcmask 253952
          %2226 = vst.msk [vmem:[%s1015] sm:$0x1] %vm2225, %v2224
        $region144: #{tpu_custom_call.1} parent=91 // pred_fallthru
          _
        %s2227 = sand.u32 %s523, 1
        %s2228 = scalar_lea.sflag [#allocation4], %s2227
        %s2229 = sand.u32 %s523, 1
        %s2230 = smul.addr %s2229, 8
        %s2231 = scalar_lea.vmem [#allocation20], %s2230
        %s2232 = sand.u32 %s549, 1
        %s2233 = scalar_lea.sflag [#allocation22], %s2232
        %s2234 = sand.u32 %s549, 1
        %s2235 = scalar_lea.vmem [#allocation21], %s2234
        // Predicated region
        $region145: #{tpu_custom_call.1} parent=91 // pred_check
          %p2236 = pneg %p533
        $region146: #{tpu_custom_call.1} parent=91 // pred_check_branch
          %2238 = sbr.rel (%p2236) target = $region148
        $region147: #{tpu_custom_call.1} parent=91 // pred_region
          %s2240 = ssub.s32 128, 128
          %2241 = vsyncadd %s2228, %s2240
          %s2242 = smul.addr %s59, 128
          %s2243 = scalar_lea.hbm %s18, %s2242
          %s2245 = sshll.u32 %s2231, 4
          %s2246 = int_to_ptr.vmem [resolvable:$true] %s2245
          %2248 = dma.vmem_to_hbm [thread:$0]  %s2246, 128, %s2243, %s2228
        $region148: #{tpu_custom_call.1} parent=91 // pred_fallthru
          _
        // Predicated region
        $region149: #{tpu_custom_call.1} parent=91 // pred_check
          %p2249 = pneg %p559
        $region150: #{tpu_custom_call.1} parent=91 // pred_check_branch
          %2251 = sbr.rel (%p2249) target = $region152
        $region151: #{tpu_custom_call.1} parent=91 // pred_region
          %s2253 = ssub.s32 16, 16
          %2254 = vsyncadd %s2233, %s2253
          %s2255 = smul.addr %s59, 16
          %s2256 = scalar_lea.hbm %s19, %s2255
          %s2258 = sshll.u32 %s2235, 4
          %s2259 = int_to_ptr.vmem [resolvable:$true] %s2258
          %2261 = dma.vmem_to_hbm [thread:$0]  %s2259, 16, %s2256, %s2233
        $region152: #{tpu_custom_call.1} parent=91 // pred_fallthru
          _
      $region92: #{tpu_custom_call.1} parent=5 // pred_fallthru
        _
      %p2262 = scmp.le.s32.totalorder 2, %s50
      // Predicated region
      $region153: #{tpu_custom_call.1} parent=5 // pred_check
        %p2263 = pneg %p2262
      $region154: #{tpu_custom_call.1} parent=5 // pred_check_branch
        %2265 = sbr.rel (%p2263) target = $region156
      $region155: #{tpu_custom_call.1} parent=5 // pred_region
        %s2266 = ssub.s32 %s50, 2
        // Predicated region
        $region157: #{tpu_custom_call.1} parent=155 // pred_check
          %p2267 = pneg %p539
        $region158: #{tpu_custom_call.1} parent=155 // pred_check_branch
          %2269 = sbr.rel (%p2267) target = $region160
        $region159: #{tpu_custom_call.1} parent=155 // pred_region
          %s2270 = sand.u32 %s524, 1
          %s2271 = scalar_lea.sflag [#allocation4], %s2270
          %s2272 = sand.u32 %s524, 1
          %s2273 = smul.addr %s2272, 8
          %s2274 = scalar_lea.vmem [#allocation20], %s2273
          %2275 = dma.done %s2271, 128
        $region160: #{tpu_custom_call.1} parent=155 // pred_fallthru
          _
        // Predicated region
        $region161: #{tpu_custom_call.1} parent=155 // pred_check
          %p2276 = pneg %p565
        $region162: #{tpu_custom_call.1} parent=155 // pred_check_branch
          %2278 = sbr.rel (%p2276) target = $region164
        $region163: #{tpu_custom_call.1} parent=155 // pred_region
          %s2279 = sand.u32 %s550, 1
          %s2280 = scalar_lea.sflag [#allocation22], %s2279
          %s2281 = sand.u32 %s550, 1
          %s2282 = scalar_lea.vmem [#allocation21], %s2281
          %2283 = dma.done %s2280, 16
        $region164: #{tpu_custom_call.1} parent=155 // pred_fallthru
          _
      $region156: #{tpu_custom_call.1} parent=5 // pred_fallthru
        _
    $region6: #{tpu_custom_call.1} parent=1 // loop_footer
      %s54 = sadd.s32 1, %s50
    $region7: #{tpu_custom_call.1} parent=1 // loop_footer_branch
      %49 = sbr.rel target = $region3
    $region8: #{tpu_custom_call.1} parent=1 // loop_exit
      _
    %2284 = vsyncpa [#allocation3], 1
    %s2285 = scalar_lea.sflag [#allocation3], 1
    %2286 = vsyncpa %s2285, 1
    %2287 = vsyncpa [#allocation6], 1
    %s2288 = scalar_lea.sflag [#allocation6], 1
    %2289 = vsyncpa %s2288, 1
    %2290 = vsyncpa [#allocation9], 1
    %s2291 = scalar_lea.sflag [#allocation9], 1
    %2292 = vsyncpa %s2291, 1
    %2293 = vsyncpa [#allocation12], 1
    %s2294 = scalar_lea.sflag [#allocation12], 1
    %2295 = vsyncpa %s2294, 1
    %2296 = vsyncpa [#allocation15], 1
    %s2297 = scalar_lea.sflag [#allocation15], 1
    %2298 = vsyncpa %s2297, 1
    %2299 = vsyncpa [#allocation18], 1
    %s2300 = scalar_lea.sflag [#allocation18], 1
    %2301 = vsyncpa %s2300, 1
    %2302 = vsyncpa [#allocation4], 1
    %s2303 = scalar_lea.sflag [#allocation4], 1
    %2304 = vsyncpa %s2303, 1
    %2305 = vsyncpa [#allocation22], 1
    %s2306 = scalar_lea.sflag [#allocation22], 1
    %2307 = vsyncpa %s2306, 1

</llo_original>
